<compile_context>
chip_gen: v6e
topology: v6e:2x2x1
jax: 0.10.0
libtpu: 0.0.40
codegen_flags: <defaults>
</compile_context>

<pallas_src>
import functools
import math

import jax
import jax.numpy as jnp
from jax.experimental import pallas as pl
from jax.experimental.pallas import tpu as pltpu


# ----------------------------------------------------------------------------
# Fused kernel: out = sigmoid(relu(relu(x@W1 + b1) @ M1 + B1) @ M2 + B2)
# (M2 / B2 / out are column slabs selected by the column grid axis.)
# ----------------------------------------------------------------------------
def rn_fused_kernel(x_ref, w1_ref, b1_ref, m1_ref, bb1_ref, m2_ref, bb2_ref,
                    o_ref):
    # fc1 + relu (bf16 MXU path, f32 accumulation): (TB, D) @ (D, F1p)
    h1 = jnp.dot(x_ref[...].astype(w1_ref.dtype), w1_ref[...],
                 preferred_element_type=jnp.float32)
    h1 = jnp.maximum(h1 + b1_ref[...], 0.0)

    # ConvTranspose2d #1 as a dense linear map on flat NCHW, + relu:
    #   (TB, F1p) @ (F1p, 16*2h*2w)
    h2 = jnp.dot(h1.astype(m1_ref.dtype), m1_ref[...],
                 preferred_element_type=jnp.float32)
    h2 = jnp.maximum(h2 + bb1_ref[...], 0.0)

    # ConvTranspose2d #2 (column slab) + sigmoid:
    #   (TB, 16*2h*2w) @ (16*2h*2w, TN)
    h3 = jnp.dot(h2.astype(m2_ref.dtype), m2_ref[...],
                 preferred_element_type=jnp.float32)
    o_ref[...] = jax.nn.sigmoid(h3 + bb2_ref[...]).astype(o_ref.dtype)


# ----------------------------------------------------------------------------
# Parameter init (PyTorch-style) and one-time preparation
# ----------------------------------------------------------------------------
def init_rn_params(key, input_dims, output_dim):
    H, W, C = input_dims
    com_h, com_w = H // 4, W // 4
    ks = jax.random.split(key, 6)

    def u(k, shape, fan_in):
        bound = 1.0 / math.sqrt(fan_in)
        return jax.random.uniform(k, shape, jnp.float32, -bound, bound)

    fc_out = 6 * com_h * com_w
    return {
        # fc1: stored pre-transposed as (in, out) = (D, F)
        "fc1_w": u(ks[0], (output_dim, fc_out), output_dim),
        "fc1_b": u(ks[1], (fc_out,), output_dim),
        # ConvTranspose2d weights in PyTorch layout (Cin, Cout, K, K)
        "conv1_w": u(ks[2], (6, 16, 5, 5), 16 * 25),
        "conv1_b": u(ks[3], (16,), 16 * 25),
        "conv2_w": u(ks[4], (16, C, 5, 5), C * 25),
        "conv2_b": u(ks[5], (C,), C * 25),
    }


def _conv_transpose_nchw(x, w_t):
    """PyTorch ConvTranspose2d(k=5, s=2, p=2, output_padding=1), no bias."""
    # swap in/out channels + spatial flip -> ordinary correlation weight
    w_conv = jnp.flip(w_t, axis=(2, 3)).transpose(1, 0, 2, 3)   # (Cout,Cin,K,K)
    return jax.lax.conv_general_dilated(
        x, w_conv,
        window_strides=(1, 1),
        padding=((2, 3), (2, 3)),           # k-1-p = 2 low, +output_padding high
        lhs_dilation=(2, 2),                # stride-2 zero insertion
        dimension_numbers=("NCHW", "OIHW", "NCHW"))


def _dense_convT_matrix(w_t, h, w):
    """Dense (Cin*h*w, Cout*2h*2w) matrix of the transposed conv, flat NCHW."""
    cin = w_t.shape[0]
    cout = w_t.shape[1]
    s_in = cin * h * w
    basis = jnp.eye(s_in, dtype=jnp.float32).reshape(s_in, cin, h, w)
    out = _conv_transpose_nchw(basis, w_t)                # (S_in, Cout, 2h, 2w)
    return out.reshape(s_in, cout * (2 * h) * (2 * w))


def prepare_params(params, input_dims, conv_mat_dtype=jnp.bfloat16):
    """One-time preprocessing (hoisted out of the forward path)."""
    H, W, C = input_dims
    com_h, com_w = H // 4, W // 4
    f1 = 6 * com_h * com_w
    f1p = ((f1 + 127) // 128) * 128          # lane-dense padded fc1 width

    # conv1 acts on the fc output reshaped to (6, com_width, com_height),
    # i.e. its "H" = com_width and "W" = com_height (PyTorch reshape order).
    m1 = _dense_convT_matrix(params["conv1_w"], com_w, com_h)          # (f1, s2)
    m2 = _dense_convT_matrix(params["conv2_w"], 2 * com_w, 2 * com_h)  # (s2, C*oh*ow)

    # Pad fc1 / M1 so h1 is a full 128-lane vreg.  Padded columns of fc1 are
    # exactly 0 after relu and hit zero rows of M1 -> result is unchanged.
    w1p = jnp.pad(params["fc1_w"], ((0, 0), (0, f1p - f1)))
    b1p = jnp.pad(params["fc1_b"], (0, f1p - f1))
    m1p = jnp.pad(m1, ((0, f1p - f1), (0, 0)))

    bb1 = jnp.repeat(params["conv1_b"], (2 * com_w) * (2 * com_h))     # NCHW-flat
    bb2 = jnp.repeat(params["conv2_b"], (4 * com_w) * (4 * com_h))

    # TODO(synk): optional fp8 (e4m3) m1/m2 with per-column scales for the v7x
    # fp8 MXU path; needs re-validation against the 5e-2 tolerance.
    return {
        "fc1_w": w1p.astype(jnp.bfloat16),       # bf16 MXU path for fc1 too
        "fc1_b": b1p.reshape(1, f1p).astype(jnp.float32),
        "m1": m1p.astype(conv_mat_dtype),
        "bb1": bb1.reshape(1, -1).astype(jnp.float32),
        "m2": m2.astype(conv_mat_dtype),
        "bb2": bb2.reshape(1, -1).astype(jnp.float32),
    }


# ----------------------------------------------------------------------------
# Forward
# ----------------------------------------------------------------------------
@functools.partial(jax.jit, static_argnames=("input_dims",))
def rn_forward(prepared, x, input_dims):
    H, W, C = input_dims
    com_h, com_w = H // 4, W // 4
    oh, ow = 4 * com_w, 4 * com_h

    n, d = x.shape
    f1p, s2 = prepared["m1"].shape
    k2, s3 = prepared["m2"].shape            # s3 = C * oh * ow (lane-dense)

    out_dtype = x.dtype
    out_itemsize = jnp.dtype(out_dtype).itemsize
    m2_itemsize = jnp.dtype(prepared["m2"].dtype).itemsize

    # ---- batch tile: fill the MXU rows (256-row passes on v6e/v7x, >=128 on
    #      v5e) and amortize per-grid-step overhead.  Whole batch if small.
    tb = n if n <= 256 else 256
    gb = -(-n // tb)

    # ---- column tile over the dominant matmul's output (M2 columns):
    #   (a) VMEM guard: m2 grows ~(H*W)^2, keep the resident slab <= 8 MiB so
    #       the kernel still fits v7x's 64 MiB physical VMEM when input_dims
    #       grows (double-buffered slab <= 16 MiB).
    #   (b) small-batch: >= 2 column tiles so both v7x TensorCores get work.
    if s3 % 128 == 0:
        col_bytes = k2 * m2_itemsize
        max_cols = max(128, ((8 * 1024 * 1024) // col_bytes) // 128 * 128)
        tn = min(s3, max_cols)
        if gb == 1 and s3 // tn < 2 and s3 >= 256:
            tn = max(128, ((s3 // 2) // 128) * 128)
    else:
        tn = s3                              # lane width not 128-aligned: whole
    gc = -(-s3 // tn)

    resident = pl.BlockSpec(memory_space=pltpu.MemorySpace.VMEM)

    # ---- explicit VMEM budget: resident weights + double-buffered tiles +
    #      intermediate slack (kept under v7x's 64 MiB physical VMEM).
    resident_bytes = sum(
        int(prepared[k].size) * jnp.dtype(prepared[k].dtype).itemsize
        for k in ("fc1_w", "fc1_b", "m1", "bb1"))
    tiled_bytes = 2 * (tb * d * jnp.dtype(x.dtype).itemsize
                       + k2 * tn * m2_itemsize
                       + tn * 4
                       + tb * tn * out_itemsize)
    scratch_bytes = tb * (f1p + s2 + tn) * 6          # f32 + bf16 intermediates
    vmem_limit = resident_bytes + tiled_bytes + scratch_bytes + (4 << 20)
    vmem_limit = max(16 << 20, min(int(vmem_limit), 60 << 20))

    cost = pl.CostEstimate(
        flops=2 * n * (d * f1p + f1p * s2 + s2 * s3),
        transcendentals=n * s3,
        bytes_accessed=int(x.size) * jnp.dtype(x.dtype).itemsize
                       + n * s3 * out_itemsize
                       + resident_bytes + k2 * s3 * m2_itemsize + s3 * 4,
    )

    out_flat = pl.pallas_call(
        rn_fused_kernel,
        out_shape=jax.ShapeDtypeStruct((n, s3), out_dtype),
        # Column axis outer, batch axis inner: the M2 slab block index does not
        # change across the inner batch loop, so it is not re-DMA'd per step.
        grid=(gc, gb),
        in_specs=[
            pl.BlockSpec((tb, d), lambda c, b: (b, 0)),    # x (batch-tiled)
            resident,                                      # fc1_w (bf16)
            resident,                                      # fc1_b
            resident,                                      # M1 (bf16)
            resident,                                      # B1 (broadcast bias)
            pl.BlockSpec((k2, tn), lambda c, b: (0, c)),   # M2 column slab
            pl.BlockSpec((1, tn), lambda c, b: (0, c)),    # B2 column slab
        ],
        out_specs=pl.BlockSpec((tb, tn), lambda c, b: (b, c)),
        compiler_params=pltpu.CompilerParams(
            dimension_semantics=("parallel", "parallel"),
            vmem_limit_bytes=vmem_limit),
        cost_estimate=cost,
    )(x, prepared["fc1_w"], prepared["fc1_b"], prepared["m1"],
      prepared["bb1"], prepared["m2"], prepared["bb2"])

    # Free metadata reshape: kernel already emitted flattened NCHW.
    return out_flat.reshape(n, C, oh, ow)


# Pure-JAX reference (float32) for validation.
def rn_reference(params, x, input_dims):
    H, W, C = input_dims
    com_h, com_w = H // 4, W // 4
    h1 = jax.nn.relu(x @ params["fc1_w"] + params["fc1_b"])
    h1 = h1.reshape(x.shape[0], 6, com_w, com_h)
    h2 = jax.nn.relu(_conv_transpose_nchw(h1, params["conv1_w"])
                     + params["conv1_b"][None, :, None, None])
    h3 = (_conv_transpose_nchw(h2, params["conv2_w"])
          + params["conv2_b"][None, :, None, None])
    return jax.nn.sigmoid(h3)


if __name__ == "__main__":
    input_dims = (16, 16, 4)   # (H, W, C): com_height = com_width = 4
    output_dim = 32
    batch = 2

    key = jax.random.PRNGKey(0)
    pkey, xkey = jax.random.split(key)
    params = init_rn_params(pkey, input_dims, output_dim)
    prepared = prepare_params(params, input_dims)           # one-time prep
    x = jax.random.normal(xkey, (batch, output_dim), jnp.float32)

    out = rn_forward(prepared, x, input_dims)
    out = jax.block_until_ready(out)

    expected = (batch, input_dims[2],
                4 * (input_dims[1] // 4), 4 * (input_dims[0] // 4))
    assert out.shape == expected, (out.shape, expected)
    assert bool(jnp.all(jnp.isfinite(out)))
    assert bool(jnp.all((out >= 0.0) & (out <= 1.0)))

    # Numerical check vs. float32 reference (bf16 matmuls -> loose tol).
    ref = rn_reference(params, x, input_dims)
    max_err = float(jnp.max(jnp.abs(out - ref)))
    assert max_err < 5e-2, max_err

    print("KERNEL_OK")
</pallas_src>

<mosaic_0001>
module attributes {stable_mosaic.version = 11 : i64} {
  func.func @rn_fused_kernel(%arg0: i32, %arg1: i32, %arg2: memref<2x32xf32, #tpu.memory_space<vmem>>, %arg3: memref<32x128xbf16, #tpu.memory_space<vmem>>, %arg4: memref<1x128xf32, #tpu.memory_space<vmem>>, %arg5: memref<128x1024xbf16, #tpu.memory_space<vmem>>, %arg6: memref<1x1024xf32, #tpu.memory_space<vmem>>, %arg7: memref<1024x512xbf16, #tpu.memory_space<vmem>>, %arg8: memref<1x512xf32, #tpu.memory_space<vmem>>, %arg9: memref<2x512xf32, #tpu.memory_space<vmem>>) attributes {dimension_semantics = [#tpu.dimension_semantics<parallel>, #tpu.dimension_semantics<parallel>], iteration_bounds = array<i64: 2, 1>, scalar_prefetch = 0 : i64, scratch_operands = 0 : i64, tpu.core_type = #tpu.core_type<tc>, window_params = [{transform_indices = @transform_0, window_bounds = array<i64: 2, 32>}, {pipeline_mode = #tpu.pipeline_mode<synchronous>, transform_indices = @transform_1, window_bounds = array<i64: 32, 128>}, {pipeline_mode = #tpu.pipeline_mode<synchronous>, transform_indices = @transform_2, window_bounds = array<i64: 1, 128>}, {pipeline_mode = #tpu.pipeline_mode<synchronous>, transform_indices = @transform_3, window_bounds = array<i64: 128, 1024>}, {pipeline_mode = #tpu.pipeline_mode<synchronous>, transform_indices = @transform_4, window_bounds = array<i64: 1, 1024>}, {transform_indices = @transform_5, window_bounds = array<i64: 1024, 512>}, {transform_indices = @transform_6, window_bounds = array<i64: 1, 512>}, {transform_indices = @transform_7, window_bounds = array<i64: 2, 512>}]} {
    %c0 = arith.constant 0 : index
    %c0_0 = arith.constant 0 : index
    %0 = vector.load %arg2[%c0, %c0_0] : memref<2x32xf32, #tpu.memory_space<vmem>>, vector<2x32xf32>
    %1 = arith.truncf %0 : vector<2x32xf32> to vector<2x32xbf16>
    %c0_1 = arith.constant 0 : index
    %c0_2 = arith.constant 0 : index
    %2 = vector.load %arg3[%c0_1, %c0_2] : memref<32x128xbf16, #tpu.memory_space<vmem>>, vector<32x128xbf16>
    %cst = arith.constant dense<0.000000e+00> : vector<2x128xf32>
    %3 = tpu.matmul %1, %2, %cst {dimension_numbers = #tpu.dot_dimension_numbers<[1], [0], [0], [1], [0, 0, 1, 1], [], []>} : vector<2x32xbf16>, vector<32x128xbf16>, vector<2x128xf32> -> vector<2x128xf32>
    %c0_3 = arith.constant 0 : index
    %c0_4 = arith.constant 0 : index
    %4 = vector.load %arg4[%c0_3, %c0_4] : memref<1x128xf32, #tpu.memory_space<vmem>>, vector<1x128xf32>
    %5 = vector.broadcast %4 : vector<1x128xf32> to vector<2x128xf32>
    %6 = arith.addf %3, %5 : vector<2x128xf32>
    %cst_5 = arith.constant 0.000000e+00 : f32
    %7 = vector.broadcast %cst_5 : f32 to vector<2x128xf32>
    %8 = arith.maximumf %6, %7 : vector<2x128xf32>
    %9 = arith.truncf %8 : vector<2x128xf32> to vector<2x128xbf16>
    %c0_6 = arith.constant 0 : index
    %c0_7 = arith.constant 0 : index
    %10 = vector.load %arg5[%c0_6, %c0_7] : memref<128x1024xbf16, #tpu.memory_space<vmem>>, vector<128x1024xbf16>
    %cst_8 = arith.constant dense<0.000000e+00> : vector<2x1024xf32>
    %11 = tpu.matmul %9, %10, %cst_8 {dimension_numbers = #tpu.dot_dimension_numbers<[1], [0], [0], [1], [0, 0, 1, 1], [], []>} : vector<2x128xbf16>, vector<128x1024xbf16>, vector<2x1024xf32> -> vector<2x1024xf32>
    %c0_9 = arith.constant 0 : index
    %c0_10 = arith.constant 0 : index
    %12 = vector.load %arg6[%c0_9, %c0_10] : memref<1x1024xf32, #tpu.memory_space<vmem>>, vector<1x1024xf32>
    %13 = vector.broadcast %12 : vector<1x1024xf32> to vector<2x1024xf32>
    %14 = arith.addf %11, %13 : vector<2x1024xf32>
    %cst_11 = arith.constant 0.000000e+00 : f32
    %15 = vector.broadcast %cst_11 : f32 to vector<2x1024xf32>
    %16 = arith.maximumf %14, %15 : vector<2x1024xf32>
    %17 = arith.truncf %16 : vector<2x1024xf32> to vector<2x1024xbf16>
    %c0_12 = arith.constant 0 : index
    %c0_13 = arith.constant 0 : index
    %18 = vector.load %arg7[%c0_12, %c0_13] : memref<1024x512xbf16, #tpu.memory_space<vmem>>, vector<1024x512xbf16>
    %cst_14 = arith.constant dense<0.000000e+00> : vector<2x512xf32>
    %19 = tpu.matmul %17, %18, %cst_14 {dimension_numbers = #tpu.dot_dimension_numbers<[1], [0], [0], [1], [0, 0, 1, 1], [], []>} : vector<2x1024xbf16>, vector<1024x512xbf16>, vector<2x512xf32> -> vector<2x512xf32>
    %c0_15 = arith.constant 0 : index
    %c0_16 = arith.constant 0 : index
    %20 = vector.load %arg8[%c0_15, %c0_16] : memref<1x512xf32, #tpu.memory_space<vmem>>, vector<1x512xf32>
    %21 = vector.broadcast %20 : vector<1x512xf32> to vector<2x512xf32>
    %22 = arith.addf %19, %21 : vector<2x512xf32>
    %23 = arith.negf %22 : vector<2x512xf32>
    %24 = math.exp %23 : vector<2x512xf32>
    %cst_17 = arith.constant 1.000000e+00 : f32
    %25 = vector.broadcast %cst_17 : f32 to vector<2x512xf32>
    %26 = arith.addf %25, %24 : vector<2x512xf32>
    %27 = arith.divf %25, %26 : vector<2x512xf32>
    %c0_18 = arith.constant 0 : index
    %c0_19 = arith.constant 0 : index
    %28 = vector.load %arg9[%c0_18, %c0_19] : memref<2x512xf32, #tpu.memory_space<vmem>>, vector<2x512xf32>
    tpu.vector_store %arg9[%c0_18, %c0_19], %27 {strides = array<i32>} : memref<2x512xf32, #tpu.memory_space<vmem>>, vector<2x512xf32>,
    return
  }
  func.func @transform_0(%arg0: i32, %arg1: i32) -> (i32, i32) {
    %c0_i32 = arith.constant 0 : i32
    %c0_i32_0 = arith.constant 0 : i32
    return %arg1, %c0_i32 : i32, i32
  }
  func.func @transform_1(%arg0: i32, %arg1: i32) -> (i32, i32) {
    %c0_i32 = arith.constant 0 : i32
    %c0_i32_0 = arith.constant 0 : i32
    %c0_i32_1 = arith.constant 0 : i32
    return %c0_i32, %c0_i32_0 : i32, i32
  }
  func.func @transform_2(%arg0: i32, %arg1: i32) -> (i32, i32) {
    %c0_i32 = arith.constant 0 : i32
    %c0_i32_0 = arith.constant 0 : i32
    %c0_i32_1 = arith.constant 0 : i32
    return %c0_i32, %c0_i32_0 : i32, i32
  }
  func.func @transform_3(%arg0: i32, %arg1: i32) -> (i32, i32) {
    %c0_i32 = arith.constant 0 : i32
    %c0_i32_0 = arith.constant 0 : i32
    %c0_i32_1 = arith.constant 0 : i32
    return %c0_i32, %c0_i32_0 : i32, i32
  }
  func.func @transform_4(%arg0: i32, %arg1: i32) -> (i32, i32) {
    %c0_i32 = arith.constant 0 : i32
    %c0_i32_0 = arith.constant 0 : i32
    %c0_i32_1 = arith.constant 0 : i32
    return %c0_i32, %c0_i32_0 : i32, i32
  }
  func.func @transform_5(%arg0: i32, %arg1: i32) -> (i32, i32) {
    %c0_i32 = arith.constant 0 : i32
    %c0_i32_0 = arith.constant 0 : i32
    return %c0_i32, %arg0 : i32, i32
  }
  func.func @transform_6(%arg0: i32, %arg1: i32) -> (i32, i32) {
    %c0_i32 = arith.constant 0 : i32
    %c0_i32_0 = arith.constant 0 : i32
    return %c0_i32, %arg0 : i32, i32
  }
  func.func @transform_7(%arg0: i32, %arg1: i32) -> (i32, i32) {
    %c0_i32 = arith.constant 0 : i32
    return %arg1, %arg0 : i32, i32
  }
}

</mosaic_0001>

<llo_original>
// kernel: rn_forward.1
$region0: #{rn_forward.1}
  #allocation0 [shape = 'u32[]', space=smem, size = 0x4, offset = 0x4, fixed_abs, tag = 'smem constant byte address 0x4 - core index']
  #allocation1 [shape = 'u32[144,128]{1,0:T(1,128)}', space=vmem, size = 0x12000, scoped, tag = 'internal scratch']
  %s0 = inlined_call_operand.hbm [shape: f32[2,32], index: 0, kind: input, shape index: {}]
  %s1 = inlined_call_operand.hbm [shape: bf16[32,128], index: 1, kind: input, shape index: {}]
  %s2 = inlined_call_operand.hbm [shape: f32[1,128], index: 2, kind: input, shape index: {}]
  %s3 = inlined_call_operand.hbm [shape: bf16[128,1024], index: 3, kind: input, shape index: {}]
  %s4 = inlined_call_operand.hbm [shape: f32[1,1024], index: 4, kind: input, shape index: {}]
  %s5 = inlined_call_operand.hbm [shape: bf16[1024,1024], index: 5, kind: input, shape index: {}]
  %s6 = inlined_call_operand.hbm [shape: f32[1,1024], index: 6, kind: input, shape index: {}]
  %s7 = inlined_call_operand.vmem [shape: f32[2,1024], index: 7, kind: output, shape index: {}]
  %s8 = sld [smem:[#allocation0]]
  $region89: #{rn_forward.1} parent=0
    _
  %s10 = ssub.s32 1, %s8
  %s11 = scalar_select 0, %s10, %s8
  $region1: #{rn_forward.1} parent=0
    #allocation2 [shape = 'u8[1024]{0}', space=vmem, size = 0x400, scoped, tag = 'input window, operand 0, single buffered']
    #allocation3 [shape = 's32[2]{0}', space=sflag, size = 0x8, scoped, tag = 'scoped memory for rn_forward.1']
    #allocation4 [shape = 'u8[8192]{0}', space=vmem, size = 0x2000, scoped, tag = 'input window, operand 1, single buffered']
    #allocation5 [shape = 's32[1]{0}', space=sflag, size = 0x4, scoped, tag = 'scoped memory for rn_forward.1']
    #allocation6 [shape = 'u8[512]{0}', space=vmem, size = 0x400, scoped, tag = 'input window, operand 2, single buffered']
    #allocation7 [shape = 'u8[262144]{0}', space=vmem, size = 0x40000, scoped, tag = 'input window, operand 3, single buffered']
    #allocation8 [shape = 's32[1]{0}', space=sflag, size = 0x4, scoped, tag = 'scoped memory for rn_forward.1']
    #allocation9 [shape = 'u8[4096]{0}', space=vmem, size = 0x1000, scoped, tag = 'input window, operand 4, single buffered']
    #allocation10 [shape = 'u8[2097152]{0}', space=vmem, size = 0x200000, scoped, tag = 'input window, operand 5']
    #allocation11 [shape = 's32[2]{0}', space=sflag, size = 0x8, scoped, tag = 'scoped memory for rn_forward.1']
    #allocation12 [shape = 'u8[4096]{0}', space=vmem, size = 0x1000, scoped, tag = 'input window, operand 6']
    %12 = vsyncpa [#allocation3], 0
    %13 = vsyncpa [#allocation5], 0
    %14 = vsyncpa [#allocation8], 0
    %15 = vsyncpa [#allocation11], 0
    %s16 = scalar_lea.sflag [#allocation11], 1
    %17 = vsyncpa %s16, 0
    loop: start=0, step=1, limit=4
    $region2: #{rn_forward.1} parent=1 // loop_pre_header
      _
    $region3: #{rn_forward.1} parent=1 // loop_header
      %s19 = sphi 0, %s23
      %p20 = scmp.ge.s32.totalorder %s19, 4
      %s26 = sphi 0, %s38
      %s27 = sphi 0, %s34
      %s28 = sphi 0, %s26
      %s29 = sphi 0, %s27
      %s30 = sphi 0, %s28
      %s31 = sphi 0, %s29
      %s41 = sphi 0, %s43
      %s44 = sphi 0, %s41
      %s45 = sphi 0, %s44
      %s61 = sphi 0, %s45
      %s65 = sphi 0, %s65
      %s67 = sphi 0, %s65
      %s68 = sphi 0, %s67
      %s82 = sphi 0, %s68
      %s86 = sphi 0, %s86
      %s88 = sphi 0, %s86
      %s89 = sphi 0, %s88
      %s103 = sphi 0, %s89
      %s107 = sphi 0, %s107
      %s109 = sphi 0, %s107
      %s110 = sphi 0, %s109
      %s124 = sphi 0, %s110
      %s128 = sphi 0, %s128
      %s130 = sphi 0, %s128
      %s131 = sphi 0, %s130
      %s145 = sphi 0, %s131
      %s151 = sphi 0, %s153
      %s154 = sphi 0, %s151
      %s155 = sphi 0, %s154
      %s171 = sphi 0, %s155
      %s177 = sphi 0, %s179
      %s180 = sphi 0, %s177
      %s181 = sphi 0, %s180
      %s197 = sphi 0, %s181
      %s205 = sphi 0, %s207
      %s208 = sphi 0, %s205
      %s209 = sphi 0, %s208
      %s225 = sphi 0, %s209
    $region4: #{rn_forward.1} parent=1 // loop_header_branch
      %22 = sbr.rel (%p20) target = $region8
    $region5: #{rn_forward.1} parent=1 // loop_body
      %s24 = ssub.s32 %s19, 1
      %s25 = ssub.s32 %s19, 2
      %s32 = sadd.s32 1, %s27
      %p33 = scmp.ge.s32.totalorder %s32, 1
      %s34 = scalar_select %p33, 0, %s32
      %s35 = sadd.s32 1, %s26
      %s36 = scalar_select %p33, %s35, %s26
      %p37 = scmp.ge.s32.totalorder %s36, 2
      %s38 = scalar_select %p37, 0, %s36
      %s39 = ssub.s32 %s27, %s34
      %p40 = scmp.eq.s32.totalorder %s39, 0
      %s42 = sadd.s32 %s41, 1
      %s43 = scalar_select %p40, %s41, %s42
      %p46 = pneg %p40
      %p47 = scmp.eq.s32.totalorder %s19, 1
      %p48 = por %p46, %p47
      %p49 = scmp.ne.s32.totalorder %s41, %s44
      %p50 = scmp.eq.s32.totalorder %s19, 0
      %p51 = por %p49, %p50
      %p52 = scmp.ne.s32.totalorder %s41, %s44
      %p53 = scmp.eq.s32.totalorder %s24, 1
      %p54 = por %p52, %p53
      %p55 = scmp.ne.s32.totalorder %s44, %s45
      %p56 = scmp.eq.s32.totalorder %s24, 0
      %p57 = por %p55, %p56
      %p58 = scmp.ne.s32.totalorder %s44, %s45
      %p59 = scmp.eq.s32.totalorder %s25, 1
      %p60 = por %p58, %p59
      %p62 = scmp.ne.s32.totalorder %s45, %s61
      %p63 = scmp.eq.s32.totalorder %s25, 0
      %p64 = por %p62, %p63
      %s66 = sadd.s32 %s65, 1
      %p69 = scmp.eq.s32.totalorder %s19, 1
      %p70 = scmp.ne.s32.totalorder %s65, %s67
      %p71 = scmp.eq.s32.totalorder %s19, 0
      %p72 = por %p70, %p71
      %p73 = scmp.ne.s32.totalorder %s65, %s67
      %p74 = scmp.eq.s32.totalorder %s24, 1
      %p75 = por %p73, %p74
      %p76 = scmp.ne.s32.totalorder %s67, %s68
      %p77 = scmp.eq.s32.totalorder %s24, 0
      %p78 = por %p76, %p77
      %p79 = scmp.ne.s32.totalorder %s67, %s68
      %p80 = scmp.eq.s32.totalorder %s25, 1
      %p81 = por %p79, %p80
      %p83 = scmp.ne.s32.totalorder %s68, %s82
      %p84 = scmp.eq.s32.totalorder %s25, 0
      %p85 = por %p83, %p84
      %s87 = sadd.s32 %s86, 1
      %p90 = scmp.eq.s32.totalorder %s19, 1
      %p91 = scmp.ne.s32.totalorder %s86, %s88
      %p92 = scmp.eq.s32.totalorder %s19, 0
      %p93 = por %p91, %p92
      %p94 = scmp.ne.s32.totalorder %s86, %s88
      %p95 = scmp.eq.s32.totalorder %s24, 1
      %p96 = por %p94, %p95
      %p97 = scmp.ne.s32.totalorder %s88, %s89
      %p98 = scmp.eq.s32.totalorder %s24, 0
      %p99 = por %p97, %p98
      %p100 = scmp.ne.s32.totalorder %s88, %s89
      %p101 = scmp.eq.s32.totalorder %s25, 1
      %p102 = por %p100, %p101
      %p104 = scmp.ne.s32.totalorder %s89, %s103
      %p105 = scmp.eq.s32.totalorder %s25, 0
      %p106 = por %p104, %p105
      %s108 = sadd.s32 %s107, 1
      %p111 = scmp.eq.s32.totalorder %s19, 1
      %p112 = scmp.ne.s32.totalorder %s107, %s109
      %p113 = scmp.eq.s32.totalorder %s19, 0
      %p114 = por %p112, %p113
      %p115 = scmp.ne.s32.totalorder %s107, %s109
      %p116 = scmp.eq.s32.totalorder %s24, 1
      %p117 = por %p115, %p116
      %p118 = scmp.ne.s32.totalorder %s109, %s110
      %p119 = scmp.eq.s32.totalorder %s24, 0
      %p120 = por %p118, %p119
      %p121 = scmp.ne.s32.totalorder %s109, %s110
      %p122 = scmp.eq.s32.totalorder %s25, 1
      %p123 = por %p121, %p122
      %p125 = scmp.ne.s32.totalorder %s110, %s124
      %p126 = scmp.eq.s32.totalorder %s25, 0
      %p127 = por %p125, %p126
      %s129 = sadd.s32 %s128, 1
      %p132 = scmp.eq.s32.totalorder %s19, 1
      %p133 = scmp.ne.s32.totalorder %s128, %s130
      %p134 = scmp.eq.s32.totalorder %s19, 0
      %p135 = por %p133, %p134
      %p136 = scmp.ne.s32.totalorder %s128, %s130
      %p137 = scmp.eq.s32.totalorder %s24, 1
      %p138 = por %p136, %p137
      %p139 = scmp.ne.s32.totalorder %s130, %s131
      %p140 = scmp.eq.s32.totalorder %s24, 0
      %p141 = por %p139, %p140
      %p142 = scmp.ne.s32.totalorder %s130, %s131
      %p143 = scmp.eq.s32.totalorder %s25, 1
      %p144 = por %p142, %p143
      %p146 = scmp.ne.s32.totalorder %s131, %s145
      %p147 = scmp.eq.s32.totalorder %s25, 0
      %p148 = por %p146, %p147
      %s149 = ssub.s32 %s26, %s38
      %p150 = scmp.eq.s32.totalorder %s149, 0
      %s152 = sadd.s32 %s151, 1
      %s153 = scalar_select %p150, %s151, %s152
      %p156 = pneg %p150
      %p157 = scmp.eq.s32.totalorder %s19, 1
      %p158 = por %p156, %p157
      %p159 = scmp.ne.s32.totalorder %s151, %s154
      %p160 = scmp.eq.s32.totalorder %s19, 0
      %p161 = por %p159, %p160
      %p162 = scmp.ne.s32.totalorder %s151, %s154
      %p163 = scmp.eq.s32.totalorder %s24, 1
      %p164 = por %p162, %p163
      %p165 = scmp.ne.s32.totalorder %s154, %s155
      %p166 = scmp.eq.s32.totalorder %s24, 0
      %p167 = por %p165, %p166
      %p168 = scmp.ne.s32.totalorder %s154, %s155
      %p169 = scmp.eq.s32.totalorder %s25, 1
      %p170 = por %p168, %p169
      %p172 = scmp.ne.s32.totalorder %s155, %s171
      %p173 = scmp.eq.s32.totalorder %s25, 0
      %p174 = por %p172, %p173
      %s175 = ssub.s32 %s26, %s38
      %p176 = scmp.eq.s32.totalorder %s175, 0
      %s178 = sadd.s32 %s177, 1
      %s179 = scalar_select %p176, %s177, %s178
      %p182 = pneg %p176
      %p183 = scmp.eq.s32.totalorder %s19, 1
      %p184 = por %p182, %p183
      %p185 = scmp.ne.s32.totalorder %s177, %s180
      %p186 = scmp.eq.s32.totalorder %s19, 0
      %p187 = por %p185, %p186
      %p188 = scmp.ne.s32.totalorder %s177, %s180
      %p189 = scmp.eq.s32.totalorder %s24, 1
      %p190 = por %p188, %p189
      %p191 = scmp.ne.s32.totalorder %s180, %s181
      %p192 = scmp.eq.s32.totalorder %s24, 0
      %p193 = por %p191, %p192
      %p194 = scmp.ne.s32.totalorder %s180, %s181
      %p195 = scmp.eq.s32.totalorder %s25, 1
      %p196 = por %p194, %p195
      %p198 = scmp.ne.s32.totalorder %s181, %s197
      %p199 = scmp.eq.s32.totalorder %s25, 0
      %p200 = por %p198, %p199
      %s201 = ssub.s32 %s27, %s34
      %s202 = ssub.s32 %s26, %s38
      %s203 = sor.u32 %s201, %s202
      %p204 = scmp.eq.s32.totalorder %s203, 0
      %s206 = sadd.s32 %s205, 1
      %s207 = scalar_select %p204, %s205, %s206
      %p210 = pneg %p204
      %p211 = scmp.eq.s32.totalorder %s19, 1
      %p212 = por %p210, %p211
      %p213 = scmp.ne.s32.totalorder %s205, %s208
      %p214 = scmp.eq.s32.totalorder %s19, 0
      %p215 = por %p213, %p214
      %p216 = scmp.ne.s32.totalorder %s205, %s208
      %p217 = scmp.eq.s32.totalorder %s24, 1
      %p218 = por %p216, %p217
      %p219 = scmp.ne.s32.totalorder %s208, %s209
      %p220 = scmp.eq.s32.totalorder %s24, 0
      %p221 = por %p219, %p220
      %p222 = scmp.ne.s32.totalorder %s208, %s209
      %p223 = scmp.eq.s32.totalorder %s25, 1
      %p224 = por %p222, %p223
      %p226 = scmp.ne.s32.totalorder %s209, %s225
      %p227 = scmp.eq.s32.totalorder %s25, 0
      %p228 = por %p226, %p227
      %p229 = scmp.le.s32.totalorder 1, %s19
      %p230 = scmp.lt.s32.totalorder %s19, 3
      %p231 = pnand %p229, %p230
      %p232 = pneg %p231
      // Predicated region
      $region9: #{rn_forward.1} parent=5 // pred_check
        _
      $region10: #{rn_forward.1} parent=5 // pred_check_branch
        %234 = sbr.rel (%p231) target = $region12
      $region11: #{rn_forward.1} parent=5 // pred_region
        %s235 = ssub.s32 %s19, 1
        // Predicated region
        $region13: #{rn_forward.1} parent=11 // pred_check
          %p236 = pneg %p57
        $region14: #{rn_forward.1} parent=11 // pred_check_branch
          %238 = sbr.rel (%p236) target = $region16
        $region15: #{rn_forward.1} parent=11 // pred_region
          %s240 = ssub.s32 32, 32
          %241 = vsyncadd [#allocation3], %s240
          %s242 = smul.addr %s29, 32
          %s243 = scalar_lea.hbm %s0, %s242
          %s245 = sshll.u32 [#allocation2], 4
          %s246 = int_to_ptr.vmem [resolvable:$true] %s245
          %248 = dma.hbm_to_vmem [thread:$0]  %s243, 32, %s246, [#allocation3]
        $region16: #{rn_forward.1} parent=11 // pred_fallthru
          _
        // Predicated region
        $region17: #{rn_forward.1} parent=11 // pred_check
          %p249 = pneg %p78
        $region18: #{rn_forward.1} parent=11 // pred_check_branch
          %251 = sbr.rel (%p249) target = $region20
        $region19: #{rn_forward.1} parent=11 // pred_region
          %s253 = ssub.s32 256, 256
          %254 = vsyncadd [#allocation5], %s253
          %s255 = sshll.u32 [#allocation4], 4
          %s256 = int_to_ptr.vmem [resolvable:$true] %s255
          %261 = dma.hbm_to_vmem [thread:$0]  %s1, 256, %s256, [#allocation5], 64, 64, 4
        $region20: #{rn_forward.1} parent=11 // pred_fallthru
          _
        // Predicated region
        $region21: #{rn_forward.1} parent=11 // pred_check
          %p262 = pneg %p99
        $region22: #{rn_forward.1} parent=11 // pred_check_branch
          %264 = sbr.rel (%p262) target = $region24
        $region23: #{rn_forward.1} parent=11 // pred_region
          %s266 = ssub.s32 16, 16
          %267 = vsyncadd [#allocation5], %s266
          %s269 = sshll.u32 [#allocation6], 4
          %s270 = int_to_ptr.vmem [resolvable:$true] %s269
          %272 = dma.hbm_to_vmem [thread:$0]  %s2, 16, %s270, [#allocation5]
        $region24: #{rn_forward.1} parent=11 // pred_fallthru
          _
        // Predicated region
        $region25: #{rn_forward.1} parent=11 // pred_check
          %p273 = pneg %p120
        $region26: #{rn_forward.1} parent=11 // pred_check_branch
          %275 = sbr.rel (%p273) target = $region28
        $region27: #{rn_forward.1} parent=11 // pred_region
          %s277 = ssub.s32 8192, 8192
          %278 = vsyncadd [#allocation8], %s277
          %s279 = sshll.u32 [#allocation7], 4
          %s280 = int_to_ptr.vmem [resolvable:$true] %s279
          %285 = dma.hbm_to_vmem [thread:$0]  %s3, 8192, %s280, [#allocation8], 512, 512, 32
        $region28: #{rn_forward.1} parent=11 // pred_fallthru
          _
        // Predicated region
        $region29: #{rn_forward.1} parent=11 // pred_check
          %p286 = pneg %p141
        $region30: #{rn_forward.1} parent=11 // pred_check_branch
          %288 = sbr.rel (%p286) target = $region32
        $region31: #{rn_forward.1} parent=11 // pred_region
          %s290 = ssub.s32 128, 128
          %291 = vsyncadd [#allocation8], %s290
          %s293 = sshll.u32 [#allocation9], 4
          %s294 = int_to_ptr.vmem [resolvable:$true] %s293
          %296 = dma.hbm_to_vmem [thread:$0]  %s4, 128, %s294, [#allocation8]
        $region32: #{rn_forward.1} parent=11 // pred_fallthru
          _
      $region12: #{rn_forward.1} parent=5 // pred_fallthru
        _
      %p297 = scmp.lt.s32.totalorder %s19, 2
      // Predicated region
      $region33: #{rn_forward.1} parent=5 // pred_check
        %p298 = pneg %p297
      $region34: #{rn_forward.1} parent=5 // pred_check_branch
        %300 = sbr.rel (%p298) target = $region36
      $region35: #{rn_forward.1} parent=5 // pred_region
        // Predicated region
        $region37: #{rn_forward.1} parent=35 // pred_check
          %p301 = pneg %p161
        $region38: #{rn_forward.1} parent=35 // pred_check_branch
          %303 = sbr.rel (%p301) target = $region40
        $region39: #{rn_forward.1} parent=35 // pred_region
          %s304 = sand.u32 %s19, 1
          %s305 = scalar_lea.sflag [#allocation11], %s304
          %s306 = sand.u32 %s151, 1
          %s307 = smul.addr %s306, 2048
          %s308 = scalar_lea.vmem [#allocation10], %s307
          %s309 = smul.u32 4, %s26
          %s311 = ssub.s32 32768, 32768
          %312 = vsyncadd %s305, %s311
          %s313 = smul.addr %s309, 64
          %s314 = scalar_lea.hbm %s5, %s313
          %s315 = sshll.u32 %s308, 4
          %s316 = int_to_ptr.vmem [resolvable:$true] %s315
          %321 = dma.hbm_to_vmem [thread:$0]  %s314, 32768, %s316, %s305, 512, 256, 16
        $region40: #{rn_forward.1} parent=35 // pred_fallthru
          _
        // Predicated region
        $region41: #{rn_forward.1} parent=35 // pred_check
          %p322 = pneg %p187
        $region42: #{rn_forward.1} parent=35 // pred_check_branch
          %324 = sbr.rel (%p322) target = $region44
        $region43: #{rn_forward.1} parent=35 // pred_region
          %s325 = sand.u32 %s19, 1
          %s326 = scalar_lea.sflag [#allocation11], %s325
          %s327 = sand.u32 %s177, 1
          %s328 = smul.addr %s327, 4
          %s329 = scalar_lea.vmem [#allocation12], %s328
          %s330 = smul.u32 4, %s26
          %s332 = ssub.s32 64, 64
          %333 = vsyncadd %s326, %s332
          %s334 = smul.addr %s330, 16
          %s335 = scalar_lea.hbm %s6, %s334
          %s337 = sshll.u32 %s329, 4
          %s338 = int_to_ptr.vmem [resolvable:$true] %s337
          %340 = dma.hbm_to_vmem [thread:$0]  %s335, 64, %s338, %s326
        $region44: #{rn_forward.1} parent=35 // pred_fallthru
          _
      $region36: #{rn_forward.1} parent=5 // pred_fallthru
        _
      %p341 = scmp.le.s32.totalorder 1, %s19
      %p342 = scmp.lt.s32.totalorder %s19, 3
      %p343 = pnand %p341, %p342
      %p344 = pneg %p343
      // Predicated region
      $region45: #{rn_forward.1} parent=5 // pred_check
        _
      $region46: #{rn_forward.1} parent=5 // pred_check_branch
        %346 = sbr.rel (%p343) target = $region48
      $region47: #{rn_forward.1} parent=5 // pred_region
        %s347 = ssub.s32 %s19, 1
        // Predicated region
        $region49: #{rn_forward.1} parent=47 // pred_check
          %p348 = pneg %p57
        $region50: #{rn_forward.1} parent=47 // pred_check_branch
          %350 = sbr.rel (%p348) target = $region52
        $region51: #{rn_forward.1} parent=47 // pred_region
          %351 = dma.done [#allocation3], 32
        $region52: #{rn_forward.1} parent=47 // pred_fallthru
          _
        // Predicated region
        $region53: #{rn_forward.1} parent=47 // pred_check
          %p352 = pneg %p78
        $region54: #{rn_forward.1} parent=47 // pred_check_branch
          %354 = sbr.rel (%p352) target = $region56
        $region55: #{rn_forward.1} parent=47 // pred_region
          %355 = dma.done [#allocation5], 256
        $region56: #{rn_forward.1} parent=47 // pred_fallthru
          _
        // Predicated region
        $region57: #{rn_forward.1} parent=47 // pred_check
          %p356 = pneg %p99
        $region58: #{rn_forward.1} parent=47 // pred_check_branch
          %358 = sbr.rel (%p356) target = $region60
        $region59: #{rn_forward.1} parent=47 // pred_region
          %359 = dma.done [#allocation5], 16
        $region60: #{rn_forward.1} parent=47 // pred_fallthru
          _
        // Predicated region
        $region61: #{rn_forward.1} parent=47 // pred_check
          %p360 = pneg %p120
        $region62: #{rn_forward.1} parent=47 // pred_check_branch
          %362 = sbr.rel (%p360) target = $region64
        $region63: #{rn_forward.1} parent=47 // pred_region
          %363 = dma.done [#allocation8], 8192
        $region64: #{rn_forward.1} parent=47 // pred_fallthru
          _
        // Predicated region
        $region65: #{rn_forward.1} parent=47 // pred_check
          %p364 = pneg %p141
        $region66: #{rn_forward.1} parent=47 // pred_check_branch
          %366 = sbr.rel (%p364) target = $region68
        $region67: #{rn_forward.1} parent=47 // pred_region
          %367 = dma.done [#allocation8], 128
        $region68: #{rn_forward.1} parent=47 // pred_fallthru
          _
        %s368 = sand.u32 %s24, 1
        %s369 = scalar_lea.sflag [#allocation11], %s368
        %s370 = sand.u32 %s154, 1
        %s371 = smul.addr %s370, 2048
        %s372 = scalar_lea.vmem [#allocation10], %s371
        // Predicated region
        $region69: #{rn_forward.1} parent=47 // pred_check
          %p373 = pneg %p167
        $region70: #{rn_forward.1} parent=47 // pred_check_branch
          %375 = sbr.rel (%p373) target = $region72
        $region71: #{rn_forward.1} parent=47 // pred_region
          %376 = dma.done %s369, 32768
        $region72: #{rn_forward.1} parent=47 // pred_fallthru
          _
        %s377 = sand.u32 %s24, 1
        %s378 = scalar_lea.sflag [#allocation11], %s377
        %s379 = sand.u32 %s180, 1
        %s380 = smul.addr %s379, 4
        %s381 = scalar_lea.vmem [#allocation12], %s380
        // Predicated region
        $region73: #{rn_forward.1} parent=47 // pred_check
          %p382 = pneg %p193
        $region74: #{rn_forward.1} parent=47 // pred_check_branch
          %384 = sbr.rel (%p382) target = $region76
        $region75: #{rn_forward.1} parent=47 // pred_region
          %385 = dma.done %s378, 64
        $region76: #{rn_forward.1} parent=47 // pred_fallthru
          _
        %p386 = pneg %p57
        %p387 = pneg %p54
        %p388 = pneg %p78
        %p389 = pneg %p75
        %p390 = pneg %p99
        %p391 = pneg %p96
        %p392 = pneg %p120
        %p393 = pneg %p117
        %p394 = pneg %p141
        %p395 = pneg %p138
        %s396 = sand.u32 %s24, 1
        %s397 = scalar_lea.sflag [#allocation11], %s396
        %s398 = sand.u32 %s154, 1
        %s399 = smul.addr %s398, 2048
        %s400 = scalar_lea.vmem [#allocation10], %s399
        %p401 = pneg %p167
        %p402 = pneg %p164
        %s403 = sand.u32 %s24, 1
        %s404 = scalar_lea.sflag [#allocation11], %s403
        %s405 = sand.u32 %s180, 1
        %s406 = smul.addr %s405, 4
        %s407 = scalar_lea.vmem [#allocation12], %s406
        %p408 = pneg %p193
        %p409 = pneg %p190
        %p410 = pneg %p221
        %p411 = pneg %p218
        %s412 = smul.u32 4, %s28
        %p413 = scmp.lt.s32.totalorder %s29, 0
        %s414 = scalar_select %p413, %s29, 0
        %p415 = scmp.lt.s32.totalorder %s412, 7
        %s416 = scalar_select %p415, %s412, 7
        %s417 = smul.addr %s414, 8
        %s418 = sadd.s32 %s416, %s417
        %s419 = smul.addr %s418, 2
        %s420 = scalar_lea.vmem %s7, %s419
        %s421 = smul.u32 4, %s28
        %s422 = smul.u32 4, %s28
        %s423 = smul.u32 4, %s28
        %p424 = scmp.lt.s32.totalorder %s29, 0
        %s425 = scalar_select %p424, %s29, 0
        %p426 = scmp.lt.s32.totalorder %s423, 7
        %s427 = scalar_select %p426, %s423, 7
        %s428 = smul.addr %s425, 8
        %s429 = sadd.s32 %s427, %s428
        %s430 = smul.addr %s429, 2
        %s431 = scalar_lea.vmem %s7, %s430
        %s432 = smul.u32 4, %s28
        %v434 = vld [vmem:[#allocation2] sm:$0x3]
        %v435 = vpack.c.bf16 %v434, %v434
        %v436 = vld [vmem:[#allocation4] sm:$0xf]
        %v437 = vld [vmem:[#allocation4 + $0x4] sm:$0xf]
        %v438 = vld [vmem:[#allocation4 + $0x8] sm:$0xf]
        %v439 = vld [vmem:[#allocation4 + $0xc] sm:$0xf]
        %v440 = vld [vmem:[#allocation6] sm:$0x1]
        %v442 = vlaneseq
        %v443 = vshrl.u32 %v442, 7
        %v444 = vsub.s32 0, %v443
        %v445 = vrot.slane %v440, %v444
        %v451 = vunpack.c.l.b16 %v436
        %v452 = vunpack.c.l.b16 %v437
        %v453 = vunpack.c.l.b16 %v438
        %v454 = vunpack.c.l.b16 %v439
        %v455 = vpack.c.b16 %v452, %v451
        %v456 = vpack.c.b16 %v454, %v453
        %vm459 = vcmask 261120
        %v461 = vsel %vm459, %v435, 0
        %463 = vmatprep.subr.bf16.mxu0 0
        %464 = vmatpush1.bf16.msra.mxu0 0
        %465 = vmatprep.subr.bf16.mxu0 0
        %466 = vmatpush1.bf16.msra.mxu0 0
        %467 = vmatprep.subr.bf16.mxu0 0
        %468 = vmatpush1.bf16.msra.mxu0 0
        %469 = vmatprep.subr.bf16.mxu0 0
        %470 = vmatpush1.bf16.msra.mxu0 0
        %471 = vmatprep.subr.bf16.mxu0 0
        %472 = vmatpush1.bf16.msra.mxu0 0
        %473 = vmatprep.subr.bf16.mxu0 0
        %474 = vmatpush1.bf16.msra.mxu0 0
        %475 = vmatprep.subr.bf16.mxu0 0
        %476 = vmatpush1.bf16.msra.mxu0 %v456
        %477 = vmatprep.subr.bf16.mxu0 0
        %478 = vmatpush1.bf16.msra.mxu0 %v455
        %479 = vmatprep.subr.bf16.mxu0 0
        %480 = vmatpush2.bf16.msra.mxu0 0
        %481 = vmatprep.subr.bf16.mxu0 0
        %482 = vmatpush2.bf16.msra.mxu0 0
        %483 = vmatprep.subr.bf16.mxu0 0
        %484 = vmatpush2.bf16.msra.mxu0 0
        %485 = vmatprep.subr.bf16.mxu0 0
        %486 = vmatpush2.bf16.msra.mxu0 0
        %487 = vmatprep.subr.bf16.mxu0 0
        %488 = vmatpush2.bf16.msra.mxu0 0
        %489 = vmatprep.subr.bf16.mxu0 0
        %490 = vmatpush2.bf16.msra.mxu0 0
        %491 = vmatprep.subr.bf16.mxu0 0
        %492 = vmatpush2.bf16.msra.mxu0 0
        %493 = vmatprep.subr.bf16.mxu0 0
        %494 = vmatpush2.bf16.msra.mxu0 0
        %495 = vmatprep.mubr.bf16.mxu0 0
        %496 = vmatmul.mubr.bf16.gmra.mxu0 %v461
        %v497 = vpop.f32.mrf.mxu0
        %v498 = vadd.f32 %v445, %v497
        %v499 = vpop.f32.mrf.mxu0
        %v500 = vpop.f32.mrf.mxu0
        %v501 = vpop.f32.mrf.mxu0
        %502 = vdwg.mxu0
        %v503 = vmax.f32 %v498, 0.0
        %v504 = vpack.c.bf16 %v503, %v503
        %v505 = vld [vmem:[#allocation7] sm:$0xff]
        %v506 = vld [vmem:[#allocation7 + $0x8] sm:$0xff]
        %v507 = vld [vmem:[#allocation7 + $0x10] sm:$0xff]
        %v508 = vld [vmem:[#allocation7 + $0x18] sm:$0xff]
        %v509 = vld [vmem:[#allocation7 + $0x20] sm:$0xff]
        %v510 = vld [vmem:[#allocation7 + $0x28] sm:$0xff]
        %v511 = vld [vmem:[#allocation7 + $0x30] sm:$0xff]
        %v512 = vld [vmem:[#allocation7 + $0x38] sm:$0xff]
        %v513 = vld [vmem:[#allocation7 + $0x40] sm:$0xff]
        %v514 = vld [vmem:[#allocation7 + $0x48] sm:$0xff]
        %v515 = vld [vmem:[#allocation7 + $0x50] sm:$0xff]
        %v516 = vld [vmem:[#allocation7 + $0x58] sm:$0xff]
        %v517 = vld [vmem:[#allocation7 + $0x60] sm:$0xff]
        %v518 = vld [vmem:[#allocation7 + $0x68] sm:$0xff]
        %v519 = vld [vmem:[#allocation7 + $0x70] sm:$0xff]
        %v520 = vld [vmem:[#allocation7 + $0x78] sm:$0xff]
        %v521 = vld [vmem:[#allocation7 + $0x80] sm:$0xff]
        %v522 = vld [vmem:[#allocation7 + $0x88] sm:$0xff]
        %v523 = vld [vmem:[#allocation7 + $0x90] sm:$0xff]
        %v524 = vld [vmem:[#allocation7 + $0x98] sm:$0xff]
        %v525 = vld [vmem:[#allocation7 + $0xa0] sm:$0xff]
        %v526 = vld [vmem:[#allocation7 + $0xa8] sm:$0xff]
        %v527 = vld [vmem:[#allocation7 + $0xb0] sm:$0xff]
        %v528 = vld [vmem:[#allocation7 + $0xb8] sm:$0xff]
        %v529 = vld [vmem:[#allocation7 + $0xc0] sm:$0xff]
        %v530 = vld [vmem:[#allocation7 + $0xc8] sm:$0xff]
        %v531 = vld [vmem:[#allocation7 + $0xd0] sm:$0xff]
        %v532 = vld [vmem:[#allocation7 + $0xd8] sm:$0xff]
        %v533 = vld [vmem:[#allocation7 + $0xe0] sm:$0xff]
        %v534 = vld [vmem:[#allocation7 + $0xe8] sm:$0xff]
        %v535 = vld [vmem:[#allocation7 + $0xf0] sm:$0xff]
        %v536 = vld [vmem:[#allocation7 + $0xf8] sm:$0xff]
        %v537 = vld [vmem:[#allocation7 + $0x100] sm:$0xff]
        %v538 = vld [vmem:[#allocation7 + $0x108] sm:$0xff]
        %v539 = vld [vmem:[#allocation7 + $0x110] sm:$0xff]
        %v540 = vld [vmem:[#allocation7 + $0x118] sm:$0xff]
        %v541 = vld [vmem:[#allocation7 + $0x120] sm:$0xff]
        %v542 = vld [vmem:[#allocation7 + $0x128] sm:$0xff]
        %v543 = vld [vmem:[#allocation7 + $0x130] sm:$0xff]
        %v544 = vld [vmem:[#allocation7 + $0x138] sm:$0xff]
        %v545 = vld [vmem:[#allocation7 + $0x140] sm:$0xff]
        %v546 = vld [vmem:[#allocation7 + $0x148] sm:$0xff]
        %v547 = vld [vmem:[#allocation7 + $0x150] sm:$0xff]
        %v548 = vld [vmem:[#allocation7 + $0x158] sm:$0xff]
        %v549 = vld [vmem:[#allocation7 + $0x160] sm:$0xff]
        %v550 = vld [vmem:[#allocation7 + $0x168] sm:$0xff]
        %v551 = vld [vmem:[#allocation7 + $0x170] sm:$0xff]
        %v552 = vld [vmem:[#allocation7 + $0x178] sm:$0xff]
        %v553 = vld [vmem:[#allocation7 + $0x180] sm:$0xff]
        %v554 = vld [vmem:[#allocation7 + $0x188] sm:$0xff]
        %v555 = vld [vmem:[#allocation7 + $0x190] sm:$0xff]
        %v556 = vld [vmem:[#allocation7 + $0x198] sm:$0xff]
        %v557 = vld [vmem:[#allocation7 + $0x1a0] sm:$0xff]
        %v558 = vld [vmem:[#allocation7 + $0x1a8] sm:$0xff]
        %v559 = vld [vmem:[#allocation7 + $0x1b0] sm:$0xff]
        %v560 = vld [vmem:[#allocation7 + $0x1b8] sm:$0xff]
        %v561 = vld [vmem:[#allocation7 + $0x1c0] sm:$0xff]
        %v562 = vld [vmem:[#allocation7 + $0x1c8] sm:$0xff]
        %v563 = vld [vmem:[#allocation7 + $0x1d0] sm:$0xff]
        %v564 = vld [vmem:[#allocation7 + $0x1d8] sm:$0xff]
        %v565 = vld [vmem:[#allocation7 + $0x1e0] sm:$0xff]
        %v566 = vld [vmem:[#allocation7 + $0x1e8] sm:$0xff]
        %v567 = vld [vmem:[#allocation7 + $0x1f0] sm:$0xff]
        %v568 = vld [vmem:[#allocation7 + $0x1f8] sm:$0xff]
        %v569 = vld [vmem:[#allocation9] sm:$0xff]
        %v571 = vlaneseq
        %v572 = vshrl.u32 %v571, 7
        %v573 = vsub.s32 0, %v572
        %v574 = vrot.slane %v569, %v573
        %v575 = vlaneseq
        %v576 = vshrl.u32 %v575, 7
        %v577 = vsub.s32 1, %v576
        %v578 = vrot.slane %v569, %v577
        %v579 = vlaneseq
        %v580 = vshrl.u32 %v579, 7
        %v581 = vsub.s32 2, %v580
        %v582 = vrot.slane %v569, %v581
        %v583 = vlaneseq
        %v584 = vshrl.u32 %v583, 7
        %v585 = vsub.s32 3, %v584
        %v586 = vrot.slane %v569, %v585
        %v587 = vlaneseq
        %v588 = vshrl.u32 %v587, 7
        %v589 = vsub.s32 4, %v588
        %v590 = vrot.slane %v569, %v589
        %v591 = vlaneseq
        %v592 = vshrl.u32 %v591, 7
        %v593 = vsub.s32 5, %v592
        %v594 = vrot.slane %v569, %v593
        %v595 = vlaneseq
        %v596 = vshrl.u32 %v595, 7
        %v597 = vsub.s32 6, %v596
        %v598 = vrot.slane %v569, %v597
        %v599 = vlaneseq
        %v600 = vshrl.u32 %v599, 7
        %v601 = vsub.s32 7, %v600
        %v602 = vrot.slane %v569, %v601
        %v675 = vunpack.c.l.b16 %v505
        %v676 = vunpack.c.h.b16 %v505
        %v677 = vunpack.c.l.b16 %v506
        %v678 = vunpack.c.h.b16 %v506
        %v679 = vunpack.c.l.b16 %v507
        %v680 = vunpack.c.h.b16 %v507
        %v681 = vunpack.c.l.b16 %v508
        %v682 = vunpack.c.h.b16 %v508
        %v683 = vunpack.c.l.b16 %v509
        %v684 = vunpack.c.h.b16 %v509
        %v685 = vunpack.c.l.b16 %v510
        %v686 = vunpack.c.h.b16 %v510
        %v687 = vunpack.c.l.b16 %v511
        %v688 = vunpack.c.h.b16 %v511
        %v689 = vunpack.c.l.b16 %v512
        %v690 = vunpack.c.h.b16 %v512
        %v691 = vunpack.c.l.b16 %v513
        %v692 = vunpack.c.h.b16 %v513
        %v693 = vunpack.c.l.b16 %v514
        %v694 = vunpack.c.h.b16 %v514
        %v695 = vunpack.c.l.b16 %v515
        %v696 = vunpack.c.h.b16 %v515
        %v697 = vunpack.c.l.b16 %v516
        %v698 = vunpack.c.h.b16 %v516
        %v699 = vunpack.c.l.b16 %v517
        %v700 = vunpack.c.h.b16 %v517
        %v701 = vunpack.c.l.b16 %v518
        %v702 = vunpack.c.h.b16 %v518
        %v703 = vunpack.c.l.b16 %v519
        %v704 = vunpack.c.h.b16 %v519
        %v705 = vunpack.c.l.b16 %v520
        %v706 = vunpack.c.h.b16 %v520
        %v707 = vunpack.c.l.b16 %v521
        %v708 = vunpack.c.h.b16 %v521
        %v709 = vunpack.c.l.b16 %v522
        %v710 = vunpack.c.h.b16 %v522
        %v711 = vunpack.c.l.b16 %v523
        %v712 = vunpack.c.h.b16 %v523
        %v713 = vunpack.c.l.b16 %v524
        %v714 = vunpack.c.h.b16 %v524
        %v715 = vunpack.c.l.b16 %v525
        %v716 = vunpack.c.h.b16 %v525
        %v717 = vunpack.c.l.b16 %v526
        %v718 = vunpack.c.h.b16 %v526
        %v719 = vunpack.c.l.b16 %v527
        %v720 = vunpack.c.h.b16 %v527
        %v721 = vunpack.c.l.b16 %v528
        %v722 = vunpack.c.h.b16 %v528
        %v723 = vunpack.c.l.b16 %v529
        %v724 = vunpack.c.h.b16 %v529
        %v725 = vunpack.c.l.b16 %v530
        %v726 = vunpack.c.h.b16 %v530
        %v727 = vunpack.c.l.b16 %v531
        %v728 = vunpack.c.h.b16 %v531
        %v729 = vunpack.c.l.b16 %v532
        %v730 = vunpack.c.h.b16 %v532
        %v731 = vunpack.c.l.b16 %v533
        %v732 = vunpack.c.h.b16 %v533
        %v733 = vunpack.c.l.b16 %v534
        %v734 = vunpack.c.h.b16 %v534
        %v735 = vunpack.c.l.b16 %v535
        %v736 = vunpack.c.h.b16 %v535
        %v737 = vunpack.c.l.b16 %v536
        %v738 = vunpack.c.h.b16 %v536
        %v739 = vunpack.c.l.b16 %v537
        %v740 = vunpack.c.h.b16 %v537
        %v741 = vunpack.c.l.b16 %v538
        %v742 = vunpack.c.h.b16 %v538
        %v743 = vunpack.c.l.b16 %v539
        %v744 = vunpack.c.h.b16 %v539
        %v745 = vunpack.c.l.b16 %v540
        %v746 = vunpack.c.h.b16 %v540
        %v747 = vunpack.c.l.b16 %v541
        %v748 = vunpack.c.h.b16 %v541
        %v749 = vunpack.c.l.b16 %v542
        %v750 = vunpack.c.h.b16 %v542
        %v751 = vunpack.c.l.b16 %v543
        %v752 = vunpack.c.h.b16 %v543
        %v753 = vunpack.c.l.b16 %v544
        %v754 = vunpack.c.h.b16 %v544
        %v755 = vunpack.c.l.b16 %v545
        %v756 = vunpack.c.h.b16 %v545
        %v757 = vunpack.c.l.b16 %v546
        %v758 = vunpack.c.h.b16 %v546
        %v759 = vunpack.c.l.b16 %v547
        %v760 = vunpack.c.h.b16 %v547
        %v761 = vunpack.c.l.b16 %v548
        %v762 = vunpack.c.h.b16 %v548
        %v763 = vunpack.c.l.b16 %v549
        %v764 = vunpack.c.h.b16 %v549
        %v765 = vunpack.c.l.b16 %v550
        %v766 = vunpack.c.h.b16 %v550
        %v767 = vunpack.c.l.b16 %v551
        %v768 = vunpack.c.h.b16 %v551
        %v769 = vunpack.c.l.b16 %v552
        %v770 = vunpack.c.h.b16 %v552
        %v771 = vunpack.c.l.b16 %v553
        %v772 = vunpack.c.h.b16 %v553
        %v773 = vunpack.c.l.b16 %v554
        %v774 = vunpack.c.h.b16 %v554
        %v775 = vunpack.c.l.b16 %v555
        %v776 = vunpack.c.h.b16 %v555
        %v777 = vunpack.c.l.b16 %v556
        %v778 = vunpack.c.h.b16 %v556
        %v779 = vunpack.c.l.b16 %v557
        %v780 = vunpack.c.h.b16 %v557
        %v781 = vunpack.c.l.b16 %v558
        %v782 = vunpack.c.h.b16 %v558
        %v783 = vunpack.c.l.b16 %v559
        %v784 = vunpack.c.h.b16 %v559
        %v785 = vunpack.c.l.b16 %v560
        %v786 = vunpack.c.h.b16 %v560
        %v787 = vunpack.c.l.b16 %v561
        %v788 = vunpack.c.h.b16 %v561
        %v789 = vunpack.c.l.b16 %v562
        %v790 = vunpack.c.h.b16 %v562
        %v791 = vunpack.c.l.b16 %v563
        %v792 = vunpack.c.h.b16 %v563
        %v793 = vunpack.c.l.b16 %v564
        %v794 = vunpack.c.h.b16 %v564
        %v795 = vunpack.c.l.b16 %v565
        %v796 = vunpack.c.h.b16 %v565
        %v797 = vunpack.c.l.b16 %v566
        %v798 = vunpack.c.h.b16 %v566
        %v799 = vunpack.c.l.b16 %v567
        %v800 = vunpack.c.h.b16 %v567
        %v801 = vunpack.c.l.b16 %v568
        %v802 = vunpack.c.h.b16 %v568
        %v803 = vpack.c.b16 %v683, %v675
        %v804 = vpack.c.b16 %v684, %v676
        %v805 = vpack.c.b16 %v685, %v677
        %v806 = vpack.c.b16 %v686, %v678
        %v807 = vpack.c.b16 %v687, %v679
        %v808 = vpack.c.b16 %v688, %v680
        %v809 = vpack.c.b16 %v689, %v681
        %v810 = vpack.c.b16 %v690, %v682
        %v811 = vpack.c.b16 %v699, %v691
        %v812 = vpack.c.b16 %v700, %v692
        %v813 = vpack.c.b16 %v701, %v693
        %v814 = vpack.c.b16 %v702, %v694
        %v815 = vpack.c.b16 %v703, %v695
        %v816 = vpack.c.b16 %v704, %v696
        %v817 = vpack.c.b16 %v705, %v697
        %v818 = vpack.c.b16 %v706, %v698
        %v819 = vpack.c.b16 %v715, %v707
        %v820 = vpack.c.b16 %v716, %v708
        %v821 = vpack.c.b16 %v717, %v709
        %v822 = vpack.c.b16 %v718, %v710
        %v823 = vpack.c.b16 %v719, %v711
        %v824 = vpack.c.b16 %v720, %v712
        %v825 = vpack.c.b16 %v721, %v713
        %v826 = vpack.c.b16 %v722, %v714
        %v827 = vpack.c.b16 %v731, %v723
        %v828 = vpack.c.b16 %v732, %v724
        %v829 = vpack.c.b16 %v733, %v725
        %v830 = vpack.c.b16 %v734, %v726
        %v831 = vpack.c.b16 %v735, %v727
        %v832 = vpack.c.b16 %v736, %v728
        %v833 = vpack.c.b16 %v737, %v729
        %v834 = vpack.c.b16 %v738, %v730
        %v835 = vpack.c.b16 %v747, %v739
        %v836 = vpack.c.b16 %v748, %v740
        %v837 = vpack.c.b16 %v749, %v741
        %v838 = vpack.c.b16 %v750, %v742
        %v839 = vpack.c.b16 %v751, %v743
        %v840 = vpack.c.b16 %v752, %v744
        %v841 = vpack.c.b16 %v753, %v745
        %v842 = vpack.c.b16 %v754, %v746
        %v843 = vpack.c.b16 %v763, %v755
        %v844 = vpack.c.b16 %v764, %v756
        %v845 = vpack.c.b16 %v765, %v757
        %v846 = vpack.c.b16 %v766, %v758
        %v847 = vpack.c.b16 %v767, %v759
        %v848 = vpack.c.b16 %v768, %v760
        %v849 = vpack.c.b16 %v769, %v761
        %v850 = vpack.c.b16 %v770, %v762
        %v851 = vpack.c.b16 %v779, %v771
        %v852 = vpack.c.b16 %v780, %v772
        %v853 = vpack.c.b16 %v781, %v773
        %v854 = vpack.c.b16 %v782, %v774
        %v855 = vpack.c.b16 %v783, %v775
        %v856 = vpack.c.b16 %v784, %v776
        %v857 = vpack.c.b16 %v785, %v777
        %v858 = vpack.c.b16 %v786, %v778
        %v859 = vpack.c.b16 %v795, %v787
        %v860 = vpack.c.b16 %v796, %v788
        %v861 = vpack.c.b16 %v797, %v789
        %v862 = vpack.c.b16 %v798, %v790
        %v863 = vpack.c.b16 %v799, %v791
        %v864 = vpack.c.b16 %v800, %v792
        %v865 = vpack.c.b16 %v801, %v793
        %v866 = vpack.c.b16 %v802, %v794
        %931 = vmatprep.subr.bf16.mxu0 %v860
        %932 = vmatpush1.bf16.msra.mxu0 %v859
        %933 = vmatprep.subr.bf16.mxu0 %v852
        %934 = vmatpush1.bf16.msra.mxu0 %v851
        %935 = vmatprep.subr.bf16.mxu0 %v844
        %936 = vmatpush1.bf16.msra.mxu0 %v843
        %937 = vmatprep.subr.bf16.mxu0 %v836
        %938 = vmatpush1.bf16.msra.mxu0 %v835
        %939 = vmatprep.subr.bf16.mxu0 %v828
        %940 = vmatpush1.bf16.msra.mxu0 %v827
        %941 = vmatprep.subr.bf16.mxu0 %v820
        %942 = vmatpush1.bf16.msra.mxu0 %v819
        %943 = vmatprep.subr.bf16.mxu0 %v812
        %944 = vmatpush1.bf16.msra.mxu0 %v811
        %945 = vmatprep.subr.bf16.mxu0 %v804
        %946 = vmatpush1.bf16.msra.mxu0 %v803
        %947 = vmatprep.subr.bf16.mxu0 0
        %948 = vmatpush2.bf16.msra.mxu0 0
        %949 = vmatprep.subr.bf16.mxu0 0
        %950 = vmatpush2.bf16.msra.mxu0 0
        %951 = vmatprep.subr.bf16.mxu0 0
        %952 = vmatpush2.bf16.msra.mxu0 0
        %953 = vmatprep.subr.bf16.mxu0 0
        %954 = vmatpush2.bf16.msra.mxu0 0
        %955 = vmatprep.subr.bf16.mxu0 0
        %956 = vmatpush2.bf16.msra.mxu0 0
        %957 = vmatprep.subr.bf16.mxu0 0
        %958 = vmatpush2.bf16.msra.mxu0 0
        %959 = vmatprep.subr.bf16.mxu0 0
        %960 = vmatpush2.bf16.msra.mxu0 0
        %961 = vmatprep.subr.bf16.mxu0 0
        %962 = vmatpush2.bf16.msra.mxu0 0
        %963 = vmatprep.mubr.bf16.mxu0 0
        %964 = vmatmul.mubr.bf16.gmra.mxu0 %v504
        %v965 = vpop.f32.mrf.mxu0
        %v966 = vadd.f32 %v574, %v965
        %v967 = vpop.f32.mrf.mxu0
        %v968 = vadd.f32 %v578, %v967
        %v969 = vpop.f32.mrf.mxu0
        %v970 = vpop.f32.mrf.mxu0
        %971 = vdwg.mxu0
        %972 = vmatprep.subr.bf16.mxu0 %v862
        %973 = vmatpush1.bf16.msra.mxu0 %v861
        %974 = vmatprep.subr.bf16.mxu0 %v854
        %975 = vmatpush1.bf16.msra.mxu0 %v853
        %976 = vmatprep.subr.bf16.mxu0 %v846
        %977 = vmatpush1.bf16.msra.mxu0 %v845
        %978 = vmatprep.subr.bf16.mxu0 %v838
        %979 = vmatpush1.bf16.msra.mxu0 %v837
        %980 = vmatprep.subr.bf16.mxu0 %v830
        %981 = vmatpush1.bf16.msra.mxu0 %v829
        %982 = vmatprep.subr.bf16.mxu0 %v822
        %983 = vmatpush1.bf16.msra.mxu0 %v821
        %984 = vmatprep.subr.bf16.mxu0 %v814
        %985 = vmatpush1.bf16.msra.mxu0 %v813
        %986 = vmatprep.subr.bf16.mxu0 %v806
        %987 = vmatpush1.bf16.msra.mxu0 %v805
        %988 = vmatprep.subr.bf16.mxu0 0
        %989 = vmatpush2.bf16.msra.mxu0 0
        %990 = vmatprep.subr.bf16.mxu0 0
        %991 = vmatpush2.bf16.msra.mxu0 0
        %992 = vmatprep.subr.bf16.mxu0 0
        %993 = vmatpush2.bf16.msra.mxu0 0
        %994 = vmatprep.subr.bf16.mxu0 0
        %995 = vmatpush2.bf16.msra.mxu0 0
        %996 = vmatprep.subr.bf16.mxu0 0
        %997 = vmatpush2.bf16.msra.mxu0 0
        %998 = vmatprep.subr.bf16.mxu0 0
        %999 = vmatpush2.bf16.msra.mxu0 0
        %1000 = vmatprep.subr.bf16.mxu0 0
        %1001 = vmatpush2.bf16.msra.mxu0 0
        %1002 = vmatprep.subr.bf16.mxu0 0
        %1003 = vmatpush2.bf16.msra.mxu0 0
        %1004 = vmatprep.mubr.bf16.mxu0 0
        %1005 = vmatmul.mubr.bf16.gmra.mxu0 %v504
        %v1006 = vpop.f32.mrf.mxu0
        %v1007 = vadd.f32 %v582, %v1006
        %v1008 = vpop.f32.mrf.mxu0
        %v1009 = vadd.f32 %v586, %v1008
        %v1010 = vpop.f32.mrf.mxu0
        %v1011 = vpop.f32.mrf.mxu0
        %1012 = vdwg.mxu0
        %1013 = vmatprep.subr.bf16.mxu0 %v864
        %1014 = vmatpush1.bf16.msra.mxu0 %v863
        %1015 = vmatprep.subr.bf16.mxu0 %v856
        %1016 = vmatpush1.bf16.msra.mxu0 %v855
        %1017 = vmatprep.subr.bf16.mxu0 %v848
        %1018 = vmatpush1.bf16.msra.mxu0 %v847
        %1019 = vmatprep.subr.bf16.mxu0 %v840
        %1020 = vmatpush1.bf16.msra.mxu0 %v839
        %1021 = vmatprep.subr.bf16.mxu0 %v832
        %1022 = vmatpush1.bf16.msra.mxu0 %v831
        %1023 = vmatprep.subr.bf16.mxu0 %v824
        %1024 = vmatpush1.bf16.msra.mxu0 %v823
        %1025 = vmatprep.subr.bf16.mxu0 %v816
        %1026 = vmatpush1.bf16.msra.mxu0 %v815
        %1027 = vmatprep.subr.bf16.mxu0 %v808
        %1028 = vmatpush1.bf16.msra.mxu0 %v807
        %1029 = vmatprep.subr.bf16.mxu0 0
        %1030 = vmatpush2.bf16.msra.mxu0 0
        %1031 = vmatprep.subr.bf16.mxu0 0
        %1032 = vmatpush2.bf16.msra.mxu0 0
        %1033 = vmatprep.subr.bf16.mxu0 0
        %1034 = vmatpush2.bf16.msra.mxu0 0
        %1035 = vmatprep.subr.bf16.mxu0 0
        %1036 = vmatpush2.bf16.msra.mxu0 0
        %1037 = vmatprep.subr.bf16.mxu0 0
        %1038 = vmatpush2.bf16.msra.mxu0 0
        %1039 = vmatprep.subr.bf16.mxu0 0
        %1040 = vmatpush2.bf16.msra.mxu0 0
        %1041 = vmatprep.subr.bf16.mxu0 0
        %1042 = vmatpush2.bf16.msra.mxu0 0
        %1043 = vmatprep.subr.bf16.mxu0 0
        %1044 = vmatpush2.bf16.msra.mxu0 0
        %1045 = vmatprep.mubr.bf16.mxu0 0
        %1046 = vmatmul.mubr.bf16.gmra.mxu0 %v504
        %v1047 = vpop.f32.mrf.mxu0
        %v1048 = vadd.f32 %v590, %v1047
        %v1049 = vpop.f32.mrf.mxu0
        %v1050 = vadd.f32 %v594, %v1049
        %v1051 = vpop.f32.mrf.mxu0
        %v1052 = vpop.f32.mrf.mxu0
        %1053 = vdwg.mxu0
        %1054 = vmatprep.subr.bf16.mxu0 %v866
        %1055 = vmatpush1.bf16.msra.mxu0 %v865
        %1056 = vmatprep.subr.bf16.mxu0 %v858
        %1057 = vmatpush1.bf16.msra.mxu0 %v857
        %1058 = vmatprep.subr.bf16.mxu0 %v850
        %1059 = vmatpush1.bf16.msra.mxu0 %v849
        %1060 = vmatprep.subr.bf16.mxu0 %v842
        %1061 = vmatpush1.bf16.msra.mxu0 %v841
        %1062 = vmatprep.subr.bf16.mxu0 %v834
        %1063 = vmatpush1.bf16.msra.mxu0 %v833
        %1064 = vmatprep.subr.bf16.mxu0 %v826
        %1065 = vmatpush1.bf16.msra.mxu0 %v825
        %1066 = vmatprep.subr.bf16.mxu0 %v818
        %1067 = vmatpush1.bf16.msra.mxu0 %v817
        %1068 = vmatprep.subr.bf16.mxu0 %v810
        %1069 = vmatpush1.bf16.msra.mxu0 %v809
        %1070 = vmatprep.subr.bf16.mxu0 0
        %1071 = vmatpush2.bf16.msra.mxu0 0
        %1072 = vmatprep.subr.bf16.mxu0 0
        %1073 = vmatpush2.bf16.msra.mxu0 0
        %1074 = vmatprep.subr.bf16.mxu0 0
        %1075 = vmatpush2.bf16.msra.mxu0 0
        %1076 = vmatprep.subr.bf16.mxu0 0
        %1077 = vmatpush2.bf16.msra.mxu0 0
        %1078 = vmatprep.subr.bf16.mxu0 0
        %1079 = vmatpush2.bf16.msra.mxu0 0
        %1080 = vmatprep.subr.bf16.mxu0 0
        %1081 = vmatpush2.bf16.msra.mxu0 0
        %1082 = vmatprep.subr.bf16.mxu0 0
        %1083 = vmatpush2.bf16.msra.mxu0 0
        %1084 = vmatprep.subr.bf16.mxu0 0
        %1085 = vmatpush2.bf16.msra.mxu0 0
        %1086 = vmatprep.mubr.bf16.mxu0 0
        %1087 = vmatmul.mubr.bf16.gmra.mxu0 %v504
        %v1088 = vpop.f32.mrf.mxu0
        %v1089 = vadd.f32 %v598, %v1088
        %v1090 = vpop.f32.mrf.mxu0
        %v1091 = vadd.f32 %v602, %v1090
        %v1092 = vpop.f32.mrf.mxu0
        %v1093 = vpop.f32.mrf.mxu0
        %1094 = vdwg.mxu0
        %v1095 = vmax.f32 %v966, 0.0
        %v1096 = vmax.f32 %v968, 0.0
        %v1097 = vmax.f32 %v1007, 0.0
        %v1098 = vmax.f32 %v1009, 0.0
        %v1099 = vmax.f32 %v1048, 0.0
        %v1100 = vmax.f32 %v1050, 0.0
        %v1101 = vmax.f32 %v1089, 0.0
        %v1102 = vmax.f32 %v1091, 0.0
        %v1103 = vpack.c.bf16 %v1095, %v1095
        %v1104 = vpack.c.bf16 %v1096, %v1096
        %v1105 = vpack.c.bf16 %v1097, %v1097
        %v1106 = vpack.c.bf16 %v1098, %v1098
        %v1107 = vpack.c.bf16 %v1099, %v1099
        %v1108 = vpack.c.bf16 %v1100, %v1100
        %v1109 = vpack.c.bf16 %v1101, %v1101
        %v1110 = vpack.c.bf16 %v1102, %v1102
        %v1111 = vld [vmem:[%s372] sm:$0xff]
        %v1112 = vld [vmem:[%s372 + $0x8] sm:$0xff]
        %v1113 = vld [vmem:[%s372 + $0x10] sm:$0xff]
        %v1114 = vld [vmem:[%s372 + $0x18] sm:$0xff]
        %v1115 = vld [vmem:[%s372 + $0x20] sm:$0xff]
        %v1116 = vld [vmem:[%s372 + $0x28] sm:$0xff]
        %v1117 = vld [vmem:[%s372 + $0x30] sm:$0xff]
        %v1118 = vld [vmem:[%s372 + $0x38] sm:$0xff]
        %v1119 = vld [vmem:[%s372 + $0x40] sm:$0xff]
        %v1120 = vld [vmem:[%s372 + $0x48] sm:$0xff]
        %v1121 = vld [vmem:[%s372 + $0x50] sm:$0xff]
        %v1122 = vld [vmem:[%s372 + $0x58] sm:$0xff]
        %v1123 = vld [vmem:[%s372 + $0x60] sm:$0xff]
        %v1124 = vld [vmem:[%s372 + $0x68] sm:$0xff]
        %v1125 = vld [vmem:[%s372 + $0x70] sm:$0xff]
        %v1126 = vld [vmem:[%s372 + $0x78] sm:$0xff]
        %v1127 = vld [vmem:[%s372 + $0x80] sm:$0xff]
        %v1128 = vld [vmem:[%s372 + $0x88] sm:$0xff]
        %v1129 = vld [vmem:[%s372 + $0x90] sm:$0xff]
        %v1130 = vld [vmem:[%s372 + $0x98] sm:$0xff]
        %v1131 = vld [vmem:[%s372 + $0xa0] sm:$0xff]
        %v1132 = vld [vmem:[%s372 + $0xa8] sm:$0xff]
        %v1133 = vld [vmem:[%s372 + $0xb0] sm:$0xff]
        %v1134 = vld [vmem:[%s372 + $0xb8] sm:$0xff]
        %v1135 = vld [vmem:[%s372 + $0xc0] sm:$0xff]
        %v1136 = vld [vmem:[%s372 + $0xc8] sm:$0xff]
        %v1137 = vld [vmem:[%s372 + $0xd0] sm:$0xff]
        %v1138 = vld [vmem:[%s372 + $0xd8] sm:$0xff]
        %v1139 = vld [vmem:[%s372 + $0xe0] sm:$0xff]
        %v1140 = vld [vmem:[%s372 + $0xe8] sm:$0xff]
        %v1141 = vld [vmem:[%s372 + $0xf0] sm:$0xff]
        %v1142 = vld [vmem:[%s372 + $0xf8] sm:$0xff]
        %v1143 = vld [vmem:[%s372 + $0x100] sm:$0xff]
        %v1144 = vld [vmem:[%s372 + $0x108] sm:$0xff]
        %v1145 = vld [vmem:[%s372 + $0x110] sm:$0xff]
        %v1146 = vld [vmem:[%s372 + $0x118] sm:$0xff]
        %v1147 = vld [vmem:[%s372 + $0x120] sm:$0xff]
        %v1148 = vld [vmem:[%s372 + $0x128] sm:$0xff]
        %v1149 = vld [vmem:[%s372 + $0x130] sm:$0xff]
        %v1150 = vld [vmem:[%s372 + $0x138] sm:$0xff]
        %v1151 = vld [vmem:[%s372 + $0x140] sm:$0xff]
        %v1152 = vld [vmem:[%s372 + $0x148] sm:$0xff]
        %v1153 = vld [vmem:[%s372 + $0x150] sm:$0xff]
        %v1154 = vld [vmem:[%s372 + $0x158] sm:$0xff]
        %v1155 = vld [vmem:[%s372 + $0x160] sm:$0xff]
        %v1156 = vld [vmem:[%s372 + $0x168] sm:$0xff]
        %v1157 = vld [vmem:[%s372 + $0x170] sm:$0xff]
        %v1158 = vld [vmem:[%s372 + $0x178] sm:$0xff]
        %v1159 = vld [vmem:[%s372 + $0x180] sm:$0xff]
        %v1160 = vld [vmem:[%s372 + $0x188] sm:$0xff]
        %v1161 = vld [vmem:[%s372 + $0x190] sm:$0xff]
        %v1162 = vld [vmem:[%s372 + $0x198] sm:$0xff]
        %v1163 = vld [vmem:[%s372 + $0x1a0] sm:$0xff]
        %v1164 = vld [vmem:[%s372 + $0x1a8] sm:$0xff]
        %v1165 = vld [vmem:[%s372 + $0x1b0] sm:$0xff]
        %v1166 = vld [vmem:[%s372 + $0x1b8] sm:$0xff]
        %v1167 = vld [vmem:[%s372 + $0x1c0] sm:$0xff]
        %v1168 = vld [vmem:[%s372 + $0x1c8] sm:$0xff]
        %v1169 = vld [vmem:[%s372 + $0x1d0] sm:$0xff]
        %v1170 = vld [vmem:[%s372 + $0x1d8] sm:$0xff]
        %v1171 = vld [vmem:[%s372 + $0x1e0] sm:$0xff]
        %v1172 = vld [vmem:[%s372 + $0x1e8] sm:$0xff]
        %v1173 = vld [vmem:[%s372 + $0x1f0] sm:$0xff]
        %v1174 = vld [vmem:[%s372 + $0x1f8] sm:$0xff]
        %v1175 = vld [vmem:[%s372 + $0x200] sm:$0xff]
        %v1176 = vld [vmem:[%s372 + $0x208] sm:$0xff]
        %v1177 = vld [vmem:[%s372 + $0x210] sm:$0xff]
        %v1178 = vld [vmem:[%s372 + $0x218] sm:$0xff]
        %v1179 = vld [vmem:[%s372 + $0x220] sm:$0xff]
        %v1180 = vld [vmem:[%s372 + $0x228] sm:$0xff]
        %v1181 = vld [vmem:[%s372 + $0x230] sm:$0xff]
        %v1182 = vld [vmem:[%s372 + $0x238] sm:$0xff]
        %v1183 = vld [vmem:[%s372 + $0x240] sm:$0xff]
        %v1184 = vld [vmem:[%s372 + $0x248] sm:$0xff]
        %v1185 = vld [vmem:[%s372 + $0x250] sm:$0xff]
        %v1186 = vld [vmem:[%s372 + $0x258] sm:$0xff]
        %v1187 = vld [vmem:[%s372 + $0x260] sm:$0xff]
        %v1188 = vld [vmem:[%s372 + $0x268] sm:$0xff]
        %v1189 = vld [vmem:[%s372 + $0x270] sm:$0xff]
        %v1190 = vld [vmem:[%s372 + $0x278] sm:$0xff]
        %v1191 = vld [vmem:[%s372 + $0x280] sm:$0xff]
        %v1192 = vld [vmem:[%s372 + $0x288] sm:$0xff]
        %v1193 = vld [vmem:[%s372 + $0x290] sm:$0xff]
        %v1194 = vld [vmem:[%s372 + $0x298] sm:$0xff]
        %v1195 = vld [vmem:[%s372 + $0x2a0] sm:$0xff]
        %v1196 = vld [vmem:[%s372 + $0x2a8] sm:$0xff]
        %v1197 = vld [vmem:[%s372 + $0x2b0] sm:$0xff]
        %v1198 = vld [vmem:[%s372 + $0x2b8] sm:$0xff]
        %v1199 = vld [vmem:[%s372 + $0x2c0] sm:$0xff]
        %v1200 = vld [vmem:[%s372 + $0x2c8] sm:$0xff]
        %v1201 = vld [vmem:[%s372 + $0x2d0] sm:$0xff]
        %v1202 = vld [vmem:[%s372 + $0x2d8] sm:$0xff]
        %v1203 = vld [vmem:[%s372 + $0x2e0] sm:$0xff]
        %v1204 = vld [vmem:[%s372 + $0x2e8] sm:$0xff]
        %v1205 = vld [vmem:[%s372 + $0x2f0] sm:$0xff]
        %v1206 = vld [vmem:[%s372 + $0x2f8] sm:$0xff]
        %v1207 = vld [vmem:[%s372 + $0x300] sm:$0xff]
        %v1208 = vld [vmem:[%s372 + $0x308] sm:$0xff]
        %v1209 = vld [vmem:[%s372 + $0x310] sm:$0xff]
        %v1210 = vld [vmem:[%s372 + $0x318] sm:$0xff]
        %v1211 = vld [vmem:[%s372 + $0x320] sm:$0xff]
        %v1212 = vld [vmem:[%s372 + $0x328] sm:$0xff]
        %v1213 = vld [vmem:[%s372 + $0x330] sm:$0xff]
        %v1214 = vld [vmem:[%s372 + $0x338] sm:$0xff]
        %v1215 = vld [vmem:[%s372 + $0x340] sm:$0xff]
        %v1216 = vld [vmem:[%s372 + $0x348] sm:$0xff]
        %v1217 = vld [vmem:[%s372 + $0x350] sm:$0xff]
        %v1218 = vld [vmem:[%s372 + $0x358] sm:$0xff]
        %v1219 = vld [vmem:[%s372 + $0x360] sm:$0xff]
        %v1220 = vld [vmem:[%s372 + $0x368] sm:$0xff]
        %v1221 = vld [vmem:[%s372 + $0x370] sm:$0xff]
        %v1222 = vld [vmem:[%s372 + $0x378] sm:$0xff]
        %v1223 = vld [vmem:[%s372 + $0x380] sm:$0xff]
        %v1224 = vld [vmem:[%s372 + $0x388] sm:$0xff]
        %v1225 = vld [vmem:[%s372 + $0x390] sm:$0xff]
        %v1226 = vld [vmem:[%s372 + $0x398] sm:$0xff]
        %v1227 = vld [vmem:[%s372 + $0x3a0] sm:$0xff]
        %v1228 = vld [vmem:[%s372 + $0x3a8] sm:$0xff]
        %v1229 = vld [vmem:[%s372 + $0x3b0] sm:$0xff]
        %v1230 = vld [vmem:[%s372 + $0x3b8] sm:$0xff]
        %v1231 = vld [vmem:[%s372 + $0x3c0] sm:$0xff]
        %v1232 = vld [vmem:[%s372 + $0x3c8] sm:$0xff]
        %v1233 = vld [vmem:[%s372 + $0x3d0] sm:$0xff]
        %v1234 = vld [vmem:[%s372 + $0x3d8] sm:$0xff]
        %v1235 = vld [vmem:[%s372 + $0x3e0] sm:$0xff]
        %v1236 = vld [vmem:[%s372 + $0x3e8] sm:$0xff]
        %v1237 = vld [vmem:[%s372 + $0x3f0] sm:$0xff]
        %v1238 = vld [vmem:[%s372 + $0x3f8] sm:$0xff]
        %v1239 = vld [vmem:[%s372 + $0x400] sm:$0xff]
        %v1240 = vld [vmem:[%s372 + $0x408] sm:$0xff]
        %v1241 = vld [vmem:[%s372 + $0x410] sm:$0xff]
        %v1242 = vld [vmem:[%s372 + $0x418] sm:$0xff]
        %v1243 = vld [vmem:[%s372 + $0x420] sm:$0xff]
        %v1244 = vld [vmem:[%s372 + $0x428] sm:$0xff]
        %v1245 = vld [vmem:[%s372 + $0x430] sm:$0xff]
        %v1246 = vld [vmem:[%s372 + $0x438] sm:$0xff]
        %v1247 = vld [vmem:[%s372 + $0x440] sm:$0xff]
        %v1248 = vld [vmem:[%s372 + $0x448] sm:$0xff]
        %v1249 = vld [vmem:[%s372 + $0x450] sm:$0xff]
        %v1250 = vld [vmem:[%s372 + $0x458] sm:$0xff]
        %v1251 = vld [vmem:[%s372 + $0x460] sm:$0xff]
        %v1252 = vld [vmem:[%s372 + $0x468] sm:$0xff]
        %v1253 = vld [vmem:[%s372 + $0x470] sm:$0xff]
        %v1254 = vld [vmem:[%s372 + $0x478] sm:$0xff]
        %v1255 = vld [vmem:[%s372 + $0x480] sm:$0xff]
        %v1256 = vld [vmem:[%s372 + $0x488] sm:$0xff]
        %v1257 = vld [vmem:[%s372 + $0x490] sm:$0xff]
        %v1258 = vld [vmem:[%s372 + $0x498] sm:$0xff]
        %v1259 = vld [vmem:[%s372 + $0x4a0] sm:$0xff]
        %v1260 = vld [vmem:[%s372 + $0x4a8] sm:$0xff]
        %v1261 = vld [vmem:[%s372 + $0x4b0] sm:$0xff]
        %v1262 = vld [vmem:[%s372 + $0x4b8] sm:$0xff]
        %v1263 = vld [vmem:[%s372 + $0x4c0] sm:$0xff]
        %v1264 = vld [vmem:[%s372 + $0x4c8] sm:$0xff]
        %v1265 = vld [vmem:[%s372 + $0x4d0] sm:$0xff]
        %v1266 = vld [vmem:[%s372 + $0x4d8] sm:$0xff]
        %v1267 = vld [vmem:[%s372 + $0x4e0] sm:$0xff]
        %v1268 = vld [vmem:[%s372 + $0x4e8] sm:$0xff]
        %v1269 = vld [vmem:[%s372 + $0x4f0] sm:$0xff]
        %v1270 = vld [vmem:[%s372 + $0x4f8] sm:$0xff]
        %v1271 = vld [vmem:[%s372 + $0x500] sm:$0xff]
        %v1272 = vld [vmem:[%s372 + $0x508] sm:$0xff]
        %v1273 = vld [vmem:[%s372 + $0x510] sm:$0xff]
        %v1274 = vld [vmem:[%s372 + $0x518] sm:$0xff]
        %v1275 = vld [vmem:[%s372 + $0x520] sm:$0xff]
        %v1276 = vld [vmem:[%s372 + $0x528] sm:$0xff]
        %v1277 = vld [vmem:[%s372 + $0x530] sm:$0xff]
        %v1278 = vld [vmem:[%s372 + $0x538] sm:$0xff]
        %v1279 = vld [vmem:[%s372 + $0x540] sm:$0xff]
        %v1280 = vld [vmem:[%s372 + $0x548] sm:$0xff]
        %v1281 = vld [vmem:[%s372 + $0x550] sm:$0xff]
        %v1282 = vld [vmem:[%s372 + $0x558] sm:$0xff]
        %v1283 = vld [vmem:[%s372 + $0x560] sm:$0xff]
        %v1284 = vld [vmem:[%s372 + $0x568] sm:$0xff]
        %v1285 = vld [vmem:[%s372 + $0x570] sm:$0xff]
        %v1286 = vld [vmem:[%s372 + $0x578] sm:$0xff]
        %v1287 = vld [vmem:[%s372 + $0x580] sm:$0xff]
        %v1288 = vld [vmem:[%s372 + $0x588] sm:$0xff]
        %v1289 = vld [vmem:[%s372 + $0x590] sm:$0xff]
        %v1290 = vld [vmem:[%s372 + $0x598] sm:$0xff]
        %v1291 = vld [vmem:[%s372 + $0x5a0] sm:$0xff]
        %v1292 = vld [vmem:[%s372 + $0x5a8] sm:$0xff]
        %v1293 = vld [vmem:[%s372 + $0x5b0] sm:$0xff]
        %v1294 = vld [vmem:[%s372 + $0x5b8] sm:$0xff]
        %v1295 = vld [vmem:[%s372 + $0x5c0] sm:$0xff]
        %v1296 = vld [vmem:[%s372 + $0x5c8] sm:$0xff]
        %v1297 = vld [vmem:[%s372 + $0x5d0] sm:$0xff]
        %v1298 = vld [vmem:[%s372 + $0x5d8] sm:$0xff]
        %v1299 = vld [vmem:[%s372 + $0x5e0] sm:$0xff]
        %v1300 = vld [vmem:[%s372 + $0x5e8] sm:$0xff]
        %v1301 = vld [vmem:[%s372 + $0x5f0] sm:$0xff]
        %v1302 = vld [vmem:[%s372 + $0x5f8] sm:$0xff]
        %v1303 = vld [vmem:[%s372 + $0x600] sm:$0xff]
        %v1304 = vld [vmem:[%s372 + $0x608] sm:$0xff]
        %v1305 = vld [vmem:[%s372 + $0x610] sm:$0xff]
        %v1306 = vld [vmem:[%s372 + $0x618] sm:$0xff]
        %v1307 = vld [vmem:[%s372 + $0x620] sm:$0xff]
        %v1308 = vld [vmem:[%s372 + $0x628] sm:$0xff]
        %v1309 = vld [vmem:[%s372 + $0x630] sm:$0xff]
        %v1310 = vld [vmem:[%s372 + $0x638] sm:$0xff]
        %v1311 = vld [vmem:[%s372 + $0x640] sm:$0xff]
        %v1312 = vld [vmem:[%s372 + $0x648] sm:$0xff]
        %v1313 = vld [vmem:[%s372 + $0x650] sm:$0xff]
        %v1314 = vld [vmem:[%s372 + $0x658] sm:$0xff]
        %v1315 = vld [vmem:[%s372 + $0x660] sm:$0xff]
        %v1316 = vld [vmem:[%s372 + $0x668] sm:$0xff]
        %v1317 = vld [vmem:[%s372 + $0x670] sm:$0xff]
        %v1318 = vld [vmem:[%s372 + $0x678] sm:$0xff]
        %v1319 = vld [vmem:[%s372 + $0x680] sm:$0xff]
        %v1320 = vld [vmem:[%s372 + $0x688] sm:$0xff]
        %v1321 = vld [vmem:[%s372 + $0x690] sm:$0xff]
        %v1322 = vld [vmem:[%s372 + $0x698] sm:$0xff]
        %v1323 = vld [vmem:[%s372 + $0x6a0] sm:$0xff]
        %v1324 = vld [vmem:[%s372 + $0x6a8] sm:$0xff]
        %v1325 = vld [vmem:[%s372 + $0x6b0] sm:$0xff]
        %v1326 = vld [vmem:[%s372 + $0x6b8] sm:$0xff]
        %v1327 = vld [vmem:[%s372 + $0x6c0] sm:$0xff]
        %v1328 = vld [vmem:[%s372 + $0x6c8] sm:$0xff]
        %v1329 = vld [vmem:[%s372 + $0x6d0] sm:$0xff]
        %v1330 = vld [vmem:[%s372 + $0x6d8] sm:$0xff]
        %v1331 = vld [vmem:[%s372 + $0x6e0] sm:$0xff]
        %v1332 = vld [vmem:[%s372 + $0x6e8] sm:$0xff]
        %v1333 = vld [vmem:[%s372 + $0x6f0] sm:$0xff]
        %v1334 = vld [vmem:[%s372 + $0x6f8] sm:$0xff]
        %v1335 = vld [vmem:[%s372 + $0x700] sm:$0xff]
        %v1336 = vld [vmem:[%s372 + $0x708] sm:$0xff]
        %v1337 = vld [vmem:[%s372 + $0x710] sm:$0xff]
        %v1338 = vld [vmem:[%s372 + $0x718] sm:$0xff]
        %v1339 = vld [vmem:[%s372 + $0x720] sm:$0xff]
        %v1340 = vld [vmem:[%s372 + $0x728] sm:$0xff]
        %v1341 = vld [vmem:[%s372 + $0x730] sm:$0xff]
        %v1342 = vld [vmem:[%s372 + $0x738] sm:$0xff]
        %v1343 = vld [vmem:[%s372 + $0x740] sm:$0xff]
        %v1344 = vld [vmem:[%s372 + $0x748] sm:$0xff]
        %v1345 = vld [vmem:[%s372 + $0x750] sm:$0xff]
        %v1346 = vld [vmem:[%s372 + $0x758] sm:$0xff]
        %v1347 = vld [vmem:[%s372 + $0x760] sm:$0xff]
        %v1348 = vld [vmem:[%s372 + $0x768] sm:$0xff]
        %v1349 = vld [vmem:[%s372 + $0x770] sm:$0xff]
        %v1350 = vld [vmem:[%s372 + $0x778] sm:$0xff]
        %v1351 = vld [vmem:[%s372 + $0x780] sm:$0xff]
        %v1352 = vld [vmem:[%s372 + $0x788] sm:$0xff]
        %v1353 = vld [vmem:[%s372 + $0x790] sm:$0xff]
        %v1354 = vld [vmem:[%s372 + $0x798] sm:$0xff]
        %v1355 = vld [vmem:[%s372 + $0x7a0] sm:$0xff]
        %v1356 = vld [vmem:[%s372 + $0x7a8] sm:$0xff]
        %v1357 = vld [vmem:[%s372 + $0x7b0] sm:$0xff]
        %v1358 = vld [vmem:[%s372 + $0x7b8] sm:$0xff]
        %v1359 = vld [vmem:[%s372 + $0x7c0] sm:$0xff]
        %v1360 = vld [vmem:[%s372 + $0x7c8] sm:$0xff]
        %v1361 = vld [vmem:[%s372 + $0x7d0] sm:$0xff]
        %v1362 = vld [vmem:[%s372 + $0x7d8] sm:$0xff]
        %v1363 = vld [vmem:[%s372 + $0x7e0] sm:$0xff]
        %v1364 = vld [vmem:[%s372 + $0x7e8] sm:$0xff]
        %v1365 = vld [vmem:[%s372 + $0x7f0] sm:$0xff]
        %v1366 = vld [vmem:[%s372 + $0x7f8] sm:$0xff]
        %v1367 = vld [vmem:[%s381] sm:$0xf]
        %v1369 = vlaneseq
        %v1370 = vshrl.u32 %v1369, 7
        %v1371 = vsub.s32 0, %v1370
        %v1372 = vrot.slane %v1367, %v1371
        %v1373 = vlaneseq
        %v1374 = vshrl.u32 %v1373, 7
        %v1375 = vsub.s32 1, %v1374
        %v1376 = vrot.slane %v1367, %v1375
        %v1377 = vlaneseq
        %v1378 = vshrl.u32 %v1377, 7
        %v1379 = vsub.s32 2, %v1378
        %v1380 = vrot.slane %v1367, %v1379
        %v1381 = vlaneseq
        %v1382 = vshrl.u32 %v1381, 7
        %v1383 = vsub.s32 3, %v1382
        %v1384 = vrot.slane %v1367, %v1383
        %v1645 = vunpack.c.l.b16 %v1111
        %v1646 = vunpack.c.h.b16 %v1111
        %v1647 = vunpack.c.l.b16 %v1112
        %v1648 = vunpack.c.h.b16 %v1112
        %v1649 = vunpack.c.l.b16 %v1113
        %v1650 = vunpack.c.h.b16 %v1113
        %v1651 = vunpack.c.l.b16 %v1114
        %v1652 = vunpack.c.h.b16 %v1114
        %v1653 = vunpack.c.l.b16 %v1115
        %v1654 = vunpack.c.h.b16 %v1115
        %v1655 = vunpack.c.l.b16 %v1116
        %v1656 = vunpack.c.h.b16 %v1116
        %v1657 = vunpack.c.l.b16 %v1117
        %v1658 = vunpack.c.h.b16 %v1117
        %v1659 = vunpack.c.l.b16 %v1118
        %v1660 = vunpack.c.h.b16 %v1118
        %v1661 = vunpack.c.l.b16 %v1119
        %v1662 = vunpack.c.h.b16 %v1119
        %v1663 = vunpack.c.l.b16 %v1120
        %v1664 = vunpack.c.h.b16 %v1120
        %v1665 = vunpack.c.l.b16 %v1121
        %v1666 = vunpack.c.h.b16 %v1121
        %v1667 = vunpack.c.l.b16 %v1122
        %v1668 = vunpack.c.h.b16 %v1122
        %v1669 = vunpack.c.l.b16 %v1123
        %v1670 = vunpack.c.h.b16 %v1123
        %v1671 = vunpack.c.l.b16 %v1124
        %v1672 = vunpack.c.h.b16 %v1124
        %v1673 = vunpack.c.l.b16 %v1125
        %v1674 = vunpack.c.h.b16 %v1125
        %v1675 = vunpack.c.l.b16 %v1126
        %v1676 = vunpack.c.h.b16 %v1126
        %v1677 = vunpack.c.l.b16 %v1127
        %v1678 = vunpack.c.h.b16 %v1127
        %v1679 = vunpack.c.l.b16 %v1128
        %v1680 = vunpack.c.h.b16 %v1128
        %v1681 = vunpack.c.l.b16 %v1129
        %v1682 = vunpack.c.h.b16 %v1129
        %v1683 = vunpack.c.l.b16 %v1130
        %v1684 = vunpack.c.h.b16 %v1130
        %v1685 = vunpack.c.l.b16 %v1131
        %v1686 = vunpack.c.h.b16 %v1131
        %v1687 = vunpack.c.l.b16 %v1132
        %v1688 = vunpack.c.h.b16 %v1132
        %v1689 = vunpack.c.l.b16 %v1133
        %v1690 = vunpack.c.h.b16 %v1133
        %v1691 = vunpack.c.l.b16 %v1134
        %v1692 = vunpack.c.h.b16 %v1134
        %v1693 = vunpack.c.l.b16 %v1135
        %v1694 = vunpack.c.h.b16 %v1135
        %v1695 = vunpack.c.l.b16 %v1136
        %v1696 = vunpack.c.h.b16 %v1136
        %v1697 = vunpack.c.l.b16 %v1137
        %v1698 = vunpack.c.h.b16 %v1137
        %v1699 = vunpack.c.l.b16 %v1138
        %v1700 = vunpack.c.h.b16 %v1138
        %v1701 = vunpack.c.l.b16 %v1139
        %v1702 = vunpack.c.h.b16 %v1139
        %v1703 = vunpack.c.l.b16 %v1140
        %v1704 = vunpack.c.h.b16 %v1140
        %v1705 = vunpack.c.l.b16 %v1141
        %v1706 = vunpack.c.h.b16 %v1141
        %v1707 = vunpack.c.l.b16 %v1142
        %v1708 = vunpack.c.h.b16 %v1142
        %v1709 = vunpack.c.l.b16 %v1143
        %v1710 = vunpack.c.h.b16 %v1143
        %v1711 = vunpack.c.l.b16 %v1144
        %v1712 = vunpack.c.h.b16 %v1144
        %v1713 = vunpack.c.l.b16 %v1145
        %v1714 = vunpack.c.h.b16 %v1145
        %v1715 = vunpack.c.l.b16 %v1146
        %v1716 = vunpack.c.h.b16 %v1146
        %v1717 = vunpack.c.l.b16 %v1147
        %v1718 = vunpack.c.h.b16 %v1147
        %v1719 = vunpack.c.l.b16 %v1148
        %v1720 = vunpack.c.h.b16 %v1148
        %v1721 = vunpack.c.l.b16 %v1149
        %v1722 = vunpack.c.h.b16 %v1149
        %v1723 = vunpack.c.l.b16 %v1150
        %v1724 = vunpack.c.h.b16 %v1150
        %v1725 = vunpack.c.l.b16 %v1151
        %v1726 = vunpack.c.h.b16 %v1151
        %v1727 = vunpack.c.l.b16 %v1152
        %v1728 = vunpack.c.h.b16 %v1152
        %v1729 = vunpack.c.l.b16 %v1153
        %v1730 = vunpack.c.h.b16 %v1153
        %v1731 = vunpack.c.l.b16 %v1154
        %v1732 = vunpack.c.h.b16 %v1154
        %v1733 = vunpack.c.l.b16 %v1155
        %v1734 = vunpack.c.h.b16 %v1155
        %v1735 = vunpack.c.l.b16 %v1156
        %v1736 = vunpack.c.h.b16 %v1156
        %v1737 = vunpack.c.l.b16 %v1157
        %v1738 = vunpack.c.h.b16 %v1157
        %v1739 = vunpack.c.l.b16 %v1158
        %v1740 = vunpack.c.h.b16 %v1158
        %v1741 = vunpack.c.l.b16 %v1159
        %v1742 = vunpack.c.h.b16 %v1159
        %v1743 = vunpack.c.l.b16 %v1160
        %v1744 = vunpack.c.h.b16 %v1160
        %v1745 = vunpack.c.l.b16 %v1161
        %v1746 = vunpack.c.h.b16 %v1161
        %v1747 = vunpack.c.l.b16 %v1162
        %v1748 = vunpack.c.h.b16 %v1162
        %v1749 = vunpack.c.l.b16 %v1163
        %v1750 = vunpack.c.h.b16 %v1163
        %v1751 = vunpack.c.l.b16 %v1164
        %v1752 = vunpack.c.h.b16 %v1164
        %v1753 = vunpack.c.l.b16 %v1165
        %v1754 = vunpack.c.h.b16 %v1165
        %v1755 = vunpack.c.l.b16 %v1166
        %v1756 = vunpack.c.h.b16 %v1166
        %v1757 = vunpack.c.l.b16 %v1167
        %v1758 = vunpack.c.h.b16 %v1167
        %v1759 = vunpack.c.l.b16 %v1168
        %v1760 = vunpack.c.h.b16 %v1168
        %v1761 = vunpack.c.l.b16 %v1169
        %v1762 = vunpack.c.h.b16 %v1169
        %v1763 = vunpack.c.l.b16 %v1170
        %v1764 = vunpack.c.h.b16 %v1170
        %v1765 = vunpack.c.l.b16 %v1171
        %v1766 = vunpack.c.h.b16 %v1171
        %v1767 = vunpack.c.l.b16 %v1172
        %v1768 = vunpack.c.h.b16 %v1172
        %v1769 = vunpack.c.l.b16 %v1173
        %v1770 = vunpack.c.h.b16 %v1173
        %v1771 = vunpack.c.l.b16 %v1174
        %v1772 = vunpack.c.h.b16 %v1174
        %v1773 = vunpack.c.l.b16 %v1175
        %v1774 = vunpack.c.h.b16 %v1175
        %v1775 = vunpack.c.l.b16 %v1176
        %v1776 = vunpack.c.h.b16 %v1176
        %v1777 = vunpack.c.l.b16 %v1177
        %v1778 = vunpack.c.h.b16 %v1177
        %v1779 = vunpack.c.l.b16 %v1178
        %v1780 = vunpack.c.h.b16 %v1178
        %v1781 = vunpack.c.l.b16 %v1179
        %v1782 = vunpack.c.h.b16 %v1179
        %v1783 = vunpack.c.l.b16 %v1180
        %v1784 = vunpack.c.h.b16 %v1180
        %v1785 = vunpack.c.l.b16 %v1181
        %v1786 = vunpack.c.h.b16 %v1181
        %v1787 = vunpack.c.l.b16 %v1182
        %v1788 = vunpack.c.h.b16 %v1182
        %v1789 = vunpack.c.l.b16 %v1183
        %v1790 = vunpack.c.h.b16 %v1183
        %v1791 = vunpack.c.l.b16 %v1184
        %v1792 = vunpack.c.h.b16 %v1184
        %v1793 = vunpack.c.l.b16 %v1185
        %v1794 = vunpack.c.h.b16 %v1185
        %v1795 = vunpack.c.l.b16 %v1186
        %v1796 = vunpack.c.h.b16 %v1186
        %v1797 = vunpack.c.l.b16 %v1187
        %v1798 = vunpack.c.h.b16 %v1187
        %v1799 = vunpack.c.l.b16 %v1188
        %v1800 = vunpack.c.h.b16 %v1188
        %v1801 = vunpack.c.l.b16 %v1189
        %v1802 = vunpack.c.h.b16 %v1189
        %v1803 = vunpack.c.l.b16 %v1190
        %v1804 = vunpack.c.h.b16 %v1190
        %v1805 = vunpack.c.l.b16 %v1191
        %v1806 = vunpack.c.h.b16 %v1191
        %v1807 = vunpack.c.l.b16 %v1192
        %v1808 = vunpack.c.h.b16 %v1192
        %v1809 = vunpack.c.l.b16 %v1193
        %v1810 = vunpack.c.h.b16 %v1193
        %v1811 = vunpack.c.l.b16 %v1194
        %v1812 = vunpack.c.h.b16 %v1194
        %v1813 = vunpack.c.l.b16 %v1195
        %v1814 = vunpack.c.h.b16 %v1195
        %v1815 = vunpack.c.l.b16 %v1196
        %v1816 = vunpack.c.h.b16 %v1196
        %v1817 = vunpack.c.l.b16 %v1197
        %v1818 = vunpack.c.h.b16 %v1197
        %v1819 = vunpack.c.l.b16 %v1198
        %v1820 = vunpack.c.h.b16 %v1198
        %v1821 = vunpack.c.l.b16 %v1199
        %v1822 = vunpack.c.h.b16 %v1199
        %v1823 = vunpack.c.l.b16 %v1200
        %v1824 = vunpack.c.h.b16 %v1200
        %v1825 = vunpack.c.l.b16 %v1201
        %v1826 = vunpack.c.h.b16 %v1201
        %v1827 = vunpack.c.l.b16 %v1202
        %v1828 = vunpack.c.h.b16 %v1202
        %v1829 = vunpack.c.l.b16 %v1203
        %v1830 = vunpack.c.h.b16 %v1203
        %v1831 = vunpack.c.l.b16 %v1204
        %v1832 = vunpack.c.h.b16 %v1204
        %v1833 = vunpack.c.l.b16 %v1205
        %v1834 = vunpack.c.h.b16 %v1205
        %v1835 = vunpack.c.l.b16 %v1206
        %v1836 = vunpack.c.h.b16 %v1206
        %v1837 = vunpack.c.l.b16 %v1207
        %v1838 = vunpack.c.h.b16 %v1207
        %v1839 = vunpack.c.l.b16 %v1208
        %v1840 = vunpack.c.h.b16 %v1208
        %v1841 = vunpack.c.l.b16 %v1209
        %v1842 = vunpack.c.h.b16 %v1209
        %v1843 = vunpack.c.l.b16 %v1210
        %v1844 = vunpack.c.h.b16 %v1210
        %v1845 = vunpack.c.l.b16 %v1211
        %v1846 = vunpack.c.h.b16 %v1211
        %v1847 = vunpack.c.l.b16 %v1212
        %v1848 = vunpack.c.h.b16 %v1212
        %v1849 = vunpack.c.l.b16 %v1213
        %v1850 = vunpack.c.h.b16 %v1213
        %v1851 = vunpack.c.l.b16 %v1214
        %v1852 = vunpack.c.h.b16 %v1214
        %v1853 = vunpack.c.l.b16 %v1215
        %v1854 = vunpack.c.h.b16 %v1215
        %v1855 = vunpack.c.l.b16 %v1216
        %v1856 = vunpack.c.h.b16 %v1216
        %v1857 = vunpack.c.l.b16 %v1217
        %v1858 = vunpack.c.h.b16 %v1217
        %v1859 = vunpack.c.l.b16 %v1218
        %v1860 = vunpack.c.h.b16 %v1218
        %v1861 = vunpack.c.l.b16 %v1219
        %v1862 = vunpack.c.h.b16 %v1219
        %v1863 = vunpack.c.l.b16 %v1220
        %v1864 = vunpack.c.h.b16 %v1220
        %v1865 = vunpack.c.l.b16 %v1221
        %v1866 = vunpack.c.h.b16 %v1221
        %v1867 = vunpack.c.l.b16 %v1222
        %v1868 = vunpack.c.h.b16 %v1222
        %v1869 = vunpack.c.l.b16 %v1223
        %v1870 = vunpack.c.h.b16 %v1223
        %v1871 = vunpack.c.l.b16 %v1224
        %v1872 = vunpack.c.h.b16 %v1224
        %v1873 = vunpack.c.l.b16 %v1225
        %v1874 = vunpack.c.h.b16 %v1225
        %v1875 = vunpack.c.l.b16 %v1226
        %v1876 = vunpack.c.h.b16 %v1226
        %v1877 = vunpack.c.l.b16 %v1227
        %v1878 = vunpack.c.h.b16 %v1227
        %v1879 = vunpack.c.l.b16 %v1228
        %v1880 = vunpack.c.h.b16 %v1228
        %v1881 = vunpack.c.l.b16 %v1229
        %v1882 = vunpack.c.h.b16 %v1229
        %v1883 = vunpack.c.l.b16 %v1230
        %v1884 = vunpack.c.h.b16 %v1230
        %v1885 = vunpack.c.l.b16 %v1231
        %v1886 = vunpack.c.h.b16 %v1231
        %v1887 = vunpack.c.l.b16 %v1232
        %v1888 = vunpack.c.h.b16 %v1232
        %v1889 = vunpack.c.l.b16 %v1233
        %v1890 = vunpack.c.h.b16 %v1233
        %v1891 = vunpack.c.l.b16 %v1234
        %v1892 = vunpack.c.h.b16 %v1234
        %v1893 = vunpack.c.l.b16 %v1235
        %v1894 = vunpack.c.h.b16 %v1235
        %v1895 = vunpack.c.l.b16 %v1236
        %v1896 = vunpack.c.h.b16 %v1236
        %v1897 = vunpack.c.l.b16 %v1237
        %v1898 = vunpack.c.h.b16 %v1237
        %v1899 = vunpack.c.l.b16 %v1238
        %v1900 = vunpack.c.h.b16 %v1238
        %v1901 = vunpack.c.l.b16 %v1239
        %v1902 = vunpack.c.h.b16 %v1239
        %v1903 = vunpack.c.l.b16 %v1240
        %v1904 = vunpack.c.h.b16 %v1240
        %v1905 = vunpack.c.l.b16 %v1241
        %v1906 = vunpack.c.h.b16 %v1241
        %v1907 = vunpack.c.l.b16 %v1242
        %v1908 = vunpack.c.h.b16 %v1242
        %v1909 = vunpack.c.l.b16 %v1243
        %v1910 = vunpack.c.h.b16 %v1243
        %v1911 = vunpack.c.l.b16 %v1244
        %v1912 = vunpack.c.h.b16 %v1244
        %v1913 = vunpack.c.l.b16 %v1245
        %v1914 = vunpack.c.h.b16 %v1245
        %v1915 = vunpack.c.l.b16 %v1246
        %v1916 = vunpack.c.h.b16 %v1246
        %v1917 = vunpack.c.l.b16 %v1247
        %v1918 = vunpack.c.h.b16 %v1247
        %v1919 = vunpack.c.l.b16 %v1248
        %v1920 = vunpack.c.h.b16 %v1248
        %v1921 = vunpack.c.l.b16 %v1249
        %v1922 = vunpack.c.h.b16 %v1249
        %v1923 = vunpack.c.l.b16 %v1250
        %v1924 = vunpack.c.h.b16 %v1250
        %v1925 = vunpack.c.l.b16 %v1251
        %v1926 = vunpack.c.h.b16 %v1251
        %v1927 = vunpack.c.l.b16 %v1252
        %v1928 = vunpack.c.h.b16 %v1252
        %v1929 = vunpack.c.l.b16 %v1253
        %v1930 = vunpack.c.h.b16 %v1253
        %v1931 = vunpack.c.l.b16 %v1254
        %v1932 = vunpack.c.h.b16 %v1254
        %v1933 = vunpack.c.l.b16 %v1255
        %v1934 = vunpack.c.h.b16 %v1255
        %v1935 = vunpack.c.l.b16 %v1256
        %v1936 = vunpack.c.h.b16 %v1256
        %v1937 = vunpack.c.l.b16 %v1257
        %v1938 = vunpack.c.h.b16 %v1257
        %v1939 = vunpack.c.l.b16 %v1258
        %v1940 = vunpack.c.h.b16 %v1258
        %v1941 = vunpack.c.l.b16 %v1259
        %v1942 = vunpack.c.h.b16 %v1259
        %v1943 = vunpack.c.l.b16 %v1260
        %v1944 = vunpack.c.h.b16 %v1260
        %v1945 = vunpack.c.l.b16 %v1261
        %v1946 = vunpack.c.h.b16 %v1261
        %v1947 = vunpack.c.l.b16 %v1262
        %v1948 = vunpack.c.h.b16 %v1262
        %v1949 = vunpack.c.l.b16 %v1263
        %v1950 = vunpack.c.h.b16 %v1263
        %v1951 = vunpack.c.l.b16 %v1264
        %v1952 = vunpack.c.h.b16 %v1264
        %v1953 = vunpack.c.l.b16 %v1265
        %v1954 = vunpack.c.h.b16 %v1265
        %v1955 = vunpack.c.l.b16 %v1266
        %v1956 = vunpack.c.h.b16 %v1266
        %v1957 = vunpack.c.l.b16 %v1267
        %v1958 = vunpack.c.h.b16 %v1267
        %v1959 = vunpack.c.l.b16 %v1268
        %v1960 = vunpack.c.h.b16 %v1268
        %v1961 = vunpack.c.l.b16 %v1269
        %v1962 = vunpack.c.h.b16 %v1269
        %v1963 = vunpack.c.l.b16 %v1270
        %v1964 = vunpack.c.h.b16 %v1270
        %v1965 = vunpack.c.l.b16 %v1271
        %v1966 = vunpack.c.h.b16 %v1271
        %v1967 = vunpack.c.l.b16 %v1272
        %v1968 = vunpack.c.h.b16 %v1272
        %v1969 = vunpack.c.l.b16 %v1273
        %v1970 = vunpack.c.h.b16 %v1273
        %v1971 = vunpack.c.l.b16 %v1274
        %v1972 = vunpack.c.h.b16 %v1274
        %v1973 = vunpack.c.l.b16 %v1275
        %v1974 = vunpack.c.h.b16 %v1275
        %v1975 = vunpack.c.l.b16 %v1276
        %v1976 = vunpack.c.h.b16 %v1276
        %v1977 = vunpack.c.l.b16 %v1277
        %v1978 = vunpack.c.h.b16 %v1277
        %v1979 = vunpack.c.l.b16 %v1278
        %v1980 = vunpack.c.h.b16 %v1278
        %v1981 = vunpack.c.l.b16 %v1279
        %v1982 = vunpack.c.h.b16 %v1279
        %v1983 = vunpack.c.l.b16 %v1280
        %v1984 = vunpack.c.h.b16 %v1280
        %v1985 = vunpack.c.l.b16 %v1281
        %v1986 = vunpack.c.h.b16 %v1281
        %v1987 = vunpack.c.l.b16 %v1282
        %v1988 = vunpack.c.h.b16 %v1282
        %v1989 = vunpack.c.l.b16 %v1283
        %v1990 = vunpack.c.h.b16 %v1283
        %v1991 = vunpack.c.l.b16 %v1284
        %v1992 = vunpack.c.h.b16 %v1284
        %v1993 = vunpack.c.l.b16 %v1285
        %v1994 = vunpack.c.h.b16 %v1285
        %v1995 = vunpack.c.l.b16 %v1286
        %v1996 = vunpack.c.h.b16 %v1286
        %v1997 = vunpack.c.l.b16 %v1287
        %v1998 = vunpack.c.h.b16 %v1287
        %v1999 = vunpack.c.l.b16 %v1288
        %v2000 = vunpack.c.h.b16 %v1288
        %v2001 = vunpack.c.l.b16 %v1289
        %v2002 = vunpack.c.h.b16 %v1289
        %v2003 = vunpack.c.l.b16 %v1290
        %v2004 = vunpack.c.h.b16 %v1290
        %v2005 = vunpack.c.l.b16 %v1291
        %v2006 = vunpack.c.h.b16 %v1291
        %v2007 = vunpack.c.l.b16 %v1292
        %v2008 = vunpack.c.h.b16 %v1292
        %v2009 = vunpack.c.l.b16 %v1293
        %v2010 = vunpack.c.h.b16 %v1293
        %v2011 = vunpack.c.l.b16 %v1294
        %v2012 = vunpack.c.h.b16 %v1294
        %v2013 = vunpack.c.l.b16 %v1295
        %v2014 = vunpack.c.h.b16 %v1295
        %v2015 = vunpack.c.l.b16 %v1296
        %v2016 = vunpack.c.h.b16 %v1296
        %v2017 = vunpack.c.l.b16 %v1297
        %v2018 = vunpack.c.h.b16 %v1297
        %v2019 = vunpack.c.l.b16 %v1298
        %v2020 = vunpack.c.h.b16 %v1298
        %v2021 = vunpack.c.l.b16 %v1299
        %v2022 = vunpack.c.h.b16 %v1299
        %v2023 = vunpack.c.l.b16 %v1300
        %v2024 = vunpack.c.h.b16 %v1300
        %v2025 = vunpack.c.l.b16 %v1301
        %v2026 = vunpack.c.h.b16 %v1301
        %v2027 = vunpack.c.l.b16 %v1302
        %v2028 = vunpack.c.h.b16 %v1302
        %v2029 = vunpack.c.l.b16 %v1303
        %v2030 = vunpack.c.h.b16 %v1303
        %v2031 = vunpack.c.l.b16 %v1304
        %v2032 = vunpack.c.h.b16 %v1304
        %v2033 = vunpack.c.l.b16 %v1305
        %v2034 = vunpack.c.h.b16 %v1305
        %v2035 = vunpack.c.l.b16 %v1306
        %v2036 = vunpack.c.h.b16 %v1306
        %v2037 = vunpack.c.l.b16 %v1307
        %v2038 = vunpack.c.h.b16 %v1307
        %v2039 = vunpack.c.l.b16 %v1308
        %v2040 = vunpack.c.h.b16 %v1308
        %v2041 = vunpack.c.l.b16 %v1309
        %v2042 = vunpack.c.h.b16 %v1309
        %v2043 = vunpack.c.l.b16 %v1310
        %v2044 = vunpack.c.h.b16 %v1310
        %v2045 = vunpack.c.l.b16 %v1311
        %v2046 = vunpack.c.h.b16 %v1311
        %v2047 = vunpack.c.l.b16 %v1312
        %v2048 = vunpack.c.h.b16 %v1312
        %v2049 = vunpack.c.l.b16 %v1313
        %v2050 = vunpack.c.h.b16 %v1313
        %v2051 = vunpack.c.l.b16 %v1314
        %v2052 = vunpack.c.h.b16 %v1314
        %v2053 = vunpack.c.l.b16 %v1315
        %v2054 = vunpack.c.h.b16 %v1315
        %v2055 = vunpack.c.l.b16 %v1316
        %v2056 = vunpack.c.h.b16 %v1316
        %v2057 = vunpack.c.l.b16 %v1317
        %v2058 = vunpack.c.h.b16 %v1317
        %v2059 = vunpack.c.l.b16 %v1318
        %v2060 = vunpack.c.h.b16 %v1318
        %v2061 = vunpack.c.l.b16 %v1319
        %v2062 = vunpack.c.h.b16 %v1319
        %v2063 = vunpack.c.l.b16 %v1320
        %v2064 = vunpack.c.h.b16 %v1320
        %v2065 = vunpack.c.l.b16 %v1321
        %v2066 = vunpack.c.h.b16 %v1321
        %v2067 = vunpack.c.l.b16 %v1322
        %v2068 = vunpack.c.h.b16 %v1322
        %v2069 = vunpack.c.l.b16 %v1323
        %v2070 = vunpack.c.h.b16 %v1323
        %v2071 = vunpack.c.l.b16 %v1324
        %v2072 = vunpack.c.h.b16 %v1324
        %v2073 = vunpack.c.l.b16 %v1325
        %v2074 = vunpack.c.h.b16 %v1325
        %v2075 = vunpack.c.l.b16 %v1326
        %v2076 = vunpack.c.h.b16 %v1326
        %v2077 = vunpack.c.l.b16 %v1327
        %v2078 = vunpack.c.h.b16 %v1327
        %v2079 = vunpack.c.l.b16 %v1328
        %v2080 = vunpack.c.h.b16 %v1328
        %v2081 = vunpack.c.l.b16 %v1329
        %v2082 = vunpack.c.h.b16 %v1329
        %v2083 = vunpack.c.l.b16 %v1330
        %v2084 = vunpack.c.h.b16 %v1330
        %v2085 = vunpack.c.l.b16 %v1331
        %v2086 = vunpack.c.h.b16 %v1331
        %v2087 = vunpack.c.l.b16 %v1332
        %v2088 = vunpack.c.h.b16 %v1332
        %v2089 = vunpack.c.l.b16 %v1333
        %v2090 = vunpack.c.h.b16 %v1333
        %v2091 = vunpack.c.l.b16 %v1334
        %v2092 = vunpack.c.h.b16 %v1334
        %v2093 = vunpack.c.l.b16 %v1335
        %v2094 = vunpack.c.h.b16 %v1335
        %v2095 = vunpack.c.l.b16 %v1336
        %v2096 = vunpack.c.h.b16 %v1336
        %v2097 = vunpack.c.l.b16 %v1337
        %v2098 = vunpack.c.h.b16 %v1337
        %v2099 = vunpack.c.l.b16 %v1338
        %v2100 = vunpack.c.h.b16 %v1338
        %v2101 = vunpack.c.l.b16 %v1339
        %v2102 = vunpack.c.h.b16 %v1339
        %v2103 = vunpack.c.l.b16 %v1340
        %v2104 = vunpack.c.h.b16 %v1340
        %v2105 = vunpack.c.l.b16 %v1341
        %v2106 = vunpack.c.h.b16 %v1341
        %v2107 = vunpack.c.l.b16 %v1342
        %v2108 = vunpack.c.h.b16 %v1342
        %v2109 = vunpack.c.l.b16 %v1343
        %v2110 = vunpack.c.h.b16 %v1343
        %v2111 = vunpack.c.l.b16 %v1344
        %v2112 = vunpack.c.h.b16 %v1344
        %v2113 = vunpack.c.l.b16 %v1345
        %v2114 = vunpack.c.h.b16 %v1345
        %v2115 = vunpack.c.l.b16 %v1346
        %v2116 = vunpack.c.h.b16 %v1346
        %v2117 = vunpack.c.l.b16 %v1347
        %v2118 = vunpack.c.h.b16 %v1347
        %v2119 = vunpack.c.l.b16 %v1348
        %v2120 = vunpack.c.h.b16 %v1348
        %v2121 = vunpack.c.l.b16 %v1349
        %v2122 = vunpack.c.h.b16 %v1349
        %v2123 = vunpack.c.l.b16 %v1350
        %v2124 = vunpack.c.h.b16 %v1350
        %v2125 = vunpack.c.l.b16 %v1351
        %v2126 = vunpack.c.h.b16 %v1351
        %v2127 = vunpack.c.l.b16 %v1352
        %v2128 = vunpack.c.h.b16 %v1352
        %v2129 = vunpack.c.l.b16 %v1353
        %v2130 = vunpack.c.h.b16 %v1353
        %v2131 = vunpack.c.l.b16 %v1354
        %v2132 = vunpack.c.h.b16 %v1354
        %v2133 = vunpack.c.l.b16 %v1355
        %v2134 = vunpack.c.h.b16 %v1355
        %v2135 = vunpack.c.l.b16 %v1356
        %v2136 = vunpack.c.h.b16 %v1356
        %v2137 = vunpack.c.l.b16 %v1357
        %v2138 = vunpack.c.h.b16 %v1357
        %v2139 = vunpack.c.l.b16 %v1358
        %v2140 = vunpack.c.h.b16 %v1358
        %v2141 = vunpack.c.l.b16 %v1359
        %v2142 = vunpack.c.h.b16 %v1359
        %v2143 = vunpack.c.l.b16 %v1360
        %v2144 = vunpack.c.h.b16 %v1360
        %v2145 = vunpack.c.l.b16 %v1361
        %v2146 = vunpack.c.h.b16 %v1361
        %v2147 = vunpack.c.l.b16 %v1362
        %v2148 = vunpack.c.h.b16 %v1362
        %v2149 = vunpack.c.l.b16 %v1363
        %v2150 = vunpack.c.h.b16 %v1363
        %v2151 = vunpack.c.l.b16 %v1364
        %v2152 = vunpack.c.h.b16 %v1364
        %v2153 = vunpack.c.l.b16 %v1365
        %v2154 = vunpack.c.h.b16 %v1365
        %v2155 = vunpack.c.l.b16 %v1366
        %v2156 = vunpack.c.h.b16 %v1366
        %v2157 = vpack.c.b16 %v1649, %v1645
        %v2158 = vpack.c.b16 %v1650, %v1646
        %v2159 = vpack.c.b16 %v1651, %v1647
        %v2160 = vpack.c.b16 %v1652, %v1648
        %v2161 = vpack.c.b16 %v1657, %v1653
        %v2162 = vpack.c.b16 %v1658, %v1654
        %v2163 = vpack.c.b16 %v1659, %v1655
        %v2164 = vpack.c.b16 %v1660, %v1656
        %v2165 = vpack.c.b16 %v1665, %v1661
        %v2166 = vpack.c.b16 %v1666, %v1662
        %v2167 = vpack.c.b16 %v1667, %v1663
        %v2168 = vpack.c.b16 %v1668, %v1664
        %v2169 = vpack.c.b16 %v1673, %v1669
        %v2170 = vpack.c.b16 %v1674, %v1670
        %v2171 = vpack.c.b16 %v1675, %v1671
        %v2172 = vpack.c.b16 %v1676, %v1672
        %v2173 = vpack.c.b16 %v1681, %v1677
        %v2174 = vpack.c.b16 %v1682, %v1678
        %v2175 = vpack.c.b16 %v1683, %v1679
        %v2176 = vpack.c.b16 %v1684, %v1680
        %v2177 = vpack.c.b16 %v1689, %v1685
        %v2178 = vpack.c.b16 %v1690, %v1686
        %v2179 = vpack.c.b16 %v1691, %v1687
        %v2180 = vpack.c.b16 %v1692, %v1688
        %v2181 = vpack.c.b16 %v1697, %v1693
        %v2182 = vpack.c.b16 %v1698, %v1694
        %v2183 = vpack.c.b16 %v1699, %v1695
        %v2184 = vpack.c.b16 %v1700, %v1696
        %v2185 = vpack.c.b16 %v1705, %v1701
        %v2186 = vpack.c.b16 %v1706, %v1702
        %v2187 = vpack.c.b16 %v1707, %v1703
        %v2188 = vpack.c.b16 %v1708, %v1704
        %v2189 = vpack.c.b16 %v1713, %v1709
        %v2190 = vpack.c.b16 %v1714, %v1710
        %v2191 = vpack.c.b16 %v1715, %v1711
        %v2192 = vpack.c.b16 %v1716, %v1712
        %v2193 = vpack.c.b16 %v1721, %v1717
        %v2194 = vpack.c.b16 %v1722, %v1718
        %v2195 = vpack.c.b16 %v1723, %v1719
        %v2196 = vpack.c.b16 %v1724, %v1720
        %v2197 = vpack.c.b16 %v1729, %v1725
        %v2198 = vpack.c.b16 %v1730, %v1726
        %v2199 = vpack.c.b16 %v1731, %v1727
        %v2200 = vpack.c.b16 %v1732, %v1728
        %v2201 = vpack.c.b16 %v1737, %v1733
        %v2202 = vpack.c.b16 %v1738, %v1734
        %v2203 = vpack.c.b16 %v1739, %v1735
        %v2204 = vpack.c.b16 %v1740, %v1736
        %v2205 = vpack.c.b16 %v1745, %v1741
        %v2206 = vpack.c.b16 %v1746, %v1742
        %v2207 = vpack.c.b16 %v1747, %v1743
        %v2208 = vpack.c.b16 %v1748, %v1744
        %v2209 = vpack.c.b16 %v1753, %v1749
        %v2210 = vpack.c.b16 %v1754, %v1750
        %v2211 = vpack.c.b16 %v1755, %v1751
        %v2212 = vpack.c.b16 %v1756, %v1752
        %v2213 = vpack.c.b16 %v1761, %v1757
        %v2214 = vpack.c.b16 %v1762, %v1758
        %v2215 = vpack.c.b16 %v1763, %v1759
        %v2216 = vpack.c.b16 %v1764, %v1760
        %v2217 = vpack.c.b16 %v1769, %v1765
        %v2218 = vpack.c.b16 %v1770, %v1766
        %v2219 = vpack.c.b16 %v1771, %v1767
        %v2220 = vpack.c.b16 %v1772, %v1768
        %v2221 = vpack.c.b16 %v1777, %v1773
        %v2222 = vpack.c.b16 %v1778, %v1774
        %v2223 = vpack.c.b16 %v1779, %v1775
        %v2224 = vpack.c.b16 %v1780, %v1776
        %v2225 = vpack.c.b16 %v1785, %v1781
        %v2226 = vpack.c.b16 %v1786, %v1782
        %v2227 = vpack.c.b16 %v1787, %v1783
        %v2228 = vpack.c.b16 %v1788, %v1784
        %v2229 = vpack.c.b16 %v1793, %v1789
        %v2230 = vpack.c.b16 %v1794, %v1790
        %v2231 = vpack.c.b16 %v1795, %v1791
        %v2232 = vpack.c.b16 %v1796, %v1792
        %v2233 = vpack.c.b16 %v1801, %v1797
        %v2234 = vpack.c.b16 %v1802, %v1798
        %v2235 = vpack.c.b16 %v1803, %v1799
        %v2236 = vpack.c.b16 %v1804, %v1800
        %v2237 = vpack.c.b16 %v1809, %v1805
        %v2238 = vpack.c.b16 %v1810, %v1806
        %v2239 = vpack.c.b16 %v1811, %v1807
        %v2240 = vpack.c.b16 %v1812, %v1808
        %v2241 = vpack.c.b16 %v1817, %v1813
        %v2242 = vpack.c.b16 %v1818, %v1814
        %v2243 = vpack.c.b16 %v1819, %v1815
        %v2244 = vpack.c.b16 %v1820, %v1816
        %v2245 = vpack.c.b16 %v1825, %v1821
        %v2246 = vpack.c.b16 %v1826, %v1822
        %v2247 = vpack.c.b16 %v1827, %v1823
        %v2248 = vpack.c.b16 %v1828, %v1824
        %v2249 = vpack.c.b16 %v1833, %v1829
        %v2250 = vpack.c.b16 %v1834, %v1830
        %v2251 = vpack.c.b16 %v1835, %v1831
        %v2252 = vpack.c.b16 %v1836, %v1832
        %v2253 = vpack.c.b16 %v1841, %v1837
        %v2254 = vpack.c.b16 %v1842, %v1838
        %v2255 = vpack.c.b16 %v1843, %v1839
        %v2256 = vpack.c.b16 %v1844, %v1840
        %v2257 = vpack.c.b16 %v1849, %v1845
        %v2258 = vpack.c.b16 %v1850, %v1846
        %v2259 = vpack.c.b16 %v1851, %v1847
        %v2260 = vpack.c.b16 %v1852, %v1848
        %v2261 = vpack.c.b16 %v1857, %v1853
        %v2262 = vpack.c.b16 %v1858, %v1854
        %v2263 = vpack.c.b16 %v1859, %v1855
        %v2264 = vpack.c.b16 %v1860, %v1856
        %v2265 = vpack.c.b16 %v1865, %v1861
        %v2266 = vpack.c.b16 %v1866, %v1862
        %v2267 = vpack.c.b16 %v1867, %v1863
        %v2268 = vpack.c.b16 %v1868, %v1864
        %v2269 = vpack.c.b16 %v1873, %v1869
        %v2270 = vpack.c.b16 %v1874, %v1870
        %v2271 = vpack.c.b16 %v1875, %v1871
        %v2272 = vpack.c.b16 %v1876, %v1872
        %v2273 = vpack.c.b16 %v1881, %v1877
        %v2274 = vpack.c.b16 %v1882, %v1878
        %v2275 = vpack.c.b16 %v1883, %v1879
        %v2276 = vpack.c.b16 %v1884, %v1880
        %v2277 = vpack.c.b16 %v1889, %v1885
        %v2278 = vpack.c.b16 %v1890, %v1886
        %v2279 = vpack.c.b16 %v1891, %v1887
        %v2280 = vpack.c.b16 %v1892, %v1888
        %v2281 = vpack.c.b16 %v1897, %v1893
        %v2282 = vpack.c.b16 %v1898, %v1894
        %v2283 = vpack.c.b16 %v1899, %v1895
        %v2284 = vpack.c.b16 %v1900, %v1896
        %v2285 = vpack.c.b16 %v1905, %v1901
        %v2286 = vpack.c.b16 %v1906, %v1902
        %v2287 = vpack.c.b16 %v1907, %v1903
        %v2288 = vpack.c.b16 %v1908, %v1904
        %v2289 = vpack.c.b16 %v1913, %v1909
        %v2290 = vpack.c.b16 %v1914, %v1910
        %v2291 = vpack.c.b16 %v1915, %v1911
        %v2292 = vpack.c.b16 %v1916, %v1912
        %v2293 = vpack.c.b16 %v1921, %v1917
        %v2294 = vpack.c.b16 %v1922, %v1918
        %v2295 = vpack.c.b16 %v1923, %v1919
        %v2296 = vpack.c.b16 %v1924, %v1920
        %v2297 = vpack.c.b16 %v1929, %v1925
        %v2298 = vpack.c.b16 %v1930, %v1926
        %v2299 = vpack.c.b16 %v1931, %v1927
        %v2300 = vpack.c.b16 %v1932, %v1928
        %v2301 = vpack.c.b16 %v1937, %v1933
        %v2302 = vpack.c.b16 %v1938, %v1934
        %v2303 = vpack.c.b16 %v1939, %v1935
        %v2304 = vpack.c.b16 %v1940, %v1936
        %v2305 = vpack.c.b16 %v1945, %v1941
        %v2306 = vpack.c.b16 %v1946, %v1942
        %v2307 = vpack.c.b16 %v1947, %v1943
        %v2308 = vpack.c.b16 %v1948, %v1944
        %v2309 = vpack.c.b16 %v1953, %v1949
        %v2310 = vpack.c.b16 %v1954, %v1950
        %v2311 = vpack.c.b16 %v1955, %v1951
        %v2312 = vpack.c.b16 %v1956, %v1952
        %v2313 = vpack.c.b16 %v1961, %v1957
        %v2314 = vpack.c.b16 %v1962, %v1958
        %v2315 = vpack.c.b16 %v1963, %v1959
        %v2316 = vpack.c.b16 %v1964, %v1960
        %v2317 = vpack.c.b16 %v1969, %v1965
        %v2318 = vpack.c.b16 %v1970, %v1966
        %v2319 = vpack.c.b16 %v1971, %v1967
        %v2320 = vpack.c.b16 %v1972, %v1968
        %v2321 = vpack.c.b16 %v1977, %v1973
        %v2322 = vpack.c.b16 %v1978, %v1974
        %v2323 = vpack.c.b16 %v1979, %v1975
        %v2324 = vpack.c.b16 %v1980, %v1976
        %v2325 = vpack.c.b16 %v1985, %v1981
        %v2326 = vpack.c.b16 %v1986, %v1982
        %v2327 = vpack.c.b16 %v1987, %v1983
        %v2328 = vpack.c.b16 %v1988, %v1984
        %v2329 = vpack.c.b16 %v1993, %v1989
        %v2330 = vpack.c.b16 %v1994, %v1990
        %v2331 = vpack.c.b16 %v1995, %v1991
        %v2332 = vpack.c.b16 %v1996, %v1992
        %v2333 = vpack.c.b16 %v2001, %v1997
        %v2334 = vpack.c.b16 %v2002, %v1998
        %v2335 = vpack.c.b16 %v2003, %v1999
        %v2336 = vpack.c.b16 %v2004, %v2000
        %v2337 = vpack.c.b16 %v2009, %v2005
        %v2338 = vpack.c.b16 %v2010, %v2006
        %v2339 = vpack.c.b16 %v2011, %v2007
        %v2340 = vpack.c.b16 %v2012, %v2008
        %v2341 = vpack.c.b16 %v2017, %v2013
        %v2342 = vpack.c.b16 %v2018, %v2014
        %v2343 = vpack.c.b16 %v2019, %v2015
        %v2344 = vpack.c.b16 %v2020, %v2016
        %v2345 = vpack.c.b16 %v2025, %v2021
        %v2346 = vpack.c.b16 %v2026, %v2022
        %v2347 = vpack.c.b16 %v2027, %v2023
        %v2348 = vpack.c.b16 %v2028, %v2024
        %v2349 = vpack.c.b16 %v2033, %v2029
        %v2350 = vpack.c.b16 %v2034, %v2030
        %v2351 = vpack.c.b16 %v2035, %v2031
        %v2352 = vpack.c.b16 %v2036, %v2032
        %v2353 = vpack.c.b16 %v2041, %v2037
        %v2354 = vpack.c.b16 %v2042, %v2038
        %v2355 = vpack.c.b16 %v2043, %v2039
        %v2356 = vpack.c.b16 %v2044, %v2040
        %v2357 = vpack.c.b16 %v2049, %v2045
        %v2358 = vpack.c.b16 %v2050, %v2046
        %v2359 = vpack.c.b16 %v2051, %v2047
        %v2360 = vpack.c.b16 %v2052, %v2048
        %v2361 = vpack.c.b16 %v2057, %v2053
        %v2362 = vpack.c.b16 %v2058, %v2054
        %v2363 = vpack.c.b16 %v2059, %v2055
        %v2364 = vpack.c.b16 %v2060, %v2056
        %v2365 = vpack.c.b16 %v2065, %v2061
        %v2366 = vpack.c.b16 %v2066, %v2062
        %v2367 = vpack.c.b16 %v2067, %v2063
        %v2368 = vpack.c.b16 %v2068, %v2064
        %v2369 = vpack.c.b16 %v2073, %v2069
        %v2370 = vpack.c.b16 %v2074, %v2070
        %v2371 = vpack.c.b16 %v2075, %v2071
        %v2372 = vpack.c.b16 %v2076, %v2072
        %v2373 = vpack.c.b16 %v2081, %v2077
        %v2374 = vpack.c.b16 %v2082, %v2078
        %v2375 = vpack.c.b16 %v2083, %v2079
        %v2376 = vpack.c.b16 %v2084, %v2080
        %v2377 = vpack.c.b16 %v2089, %v2085
        %v2378 = vpack.c.b16 %v2090, %v2086
        %v2379 = vpack.c.b16 %v2091, %v2087
        %v2380 = vpack.c.b16 %v2092, %v2088
        %v2381 = vpack.c.b16 %v2097, %v2093
        %v2382 = vpack.c.b16 %v2098, %v2094
        %v2383 = vpack.c.b16 %v2099, %v2095
        %v2384 = vpack.c.b16 %v2100, %v2096
        %v2385 = vpack.c.b16 %v2105, %v2101
        %v2386 = vpack.c.b16 %v2106, %v2102
        %v2387 = vpack.c.b16 %v2107, %v2103
        %v2388 = vpack.c.b16 %v2108, %v2104
        %v2389 = vpack.c.b16 %v2113, %v2109
        %v2390 = vpack.c.b16 %v2114, %v2110
        %v2391 = vpack.c.b16 %v2115, %v2111
        %v2392 = vpack.c.b16 %v2116, %v2112
        %v2393 = vpack.c.b16 %v2121, %v2117
        %v2394 = vpack.c.b16 %v2122, %v2118
        %v2395 = vpack.c.b16 %v2123, %v2119
        %v2396 = vpack.c.b16 %v2124, %v2120
        %v2397 = vpack.c.b16 %v2129, %v2125
        %v2398 = vpack.c.b16 %v2130, %v2126
        %v2399 = vpack.c.b16 %v2131, %v2127
        %v2400 = vpack.c.b16 %v2132, %v2128
        %v2401 = vpack.c.b16 %v2137, %v2133
        %v2402 = vpack.c.b16 %v2138, %v2134
        %v2403 = vpack.c.b16 %v2139, %v2135
        %v2404 = vpack.c.b16 %v2140, %v2136
        %v2405 = vpack.c.b16 %v2145, %v2141
        %v2406 = vpack.c.b16 %v2146, %v2142
        %v2407 = vpack.c.b16 %v2147, %v2143
        %v2408 = vpack.c.b16 %v2148, %v2144
        %v2409 = vpack.c.b16 %v2153, %v2149
        %v2410 = vpack.c.b16 %v2154, %v2150
        %v2411 = vpack.c.b16 %v2155, %v2151
        %v2412 = vpack.c.b16 %v2156, %v2152
        %2669 = vmatprep.subr.bf16.mxu0 %v2186
        %2670 = vmatpush1.bf16.msra.mxu0 %v2185
        %2671 = vmatprep.subr.bf16.mxu0 %v2182
        %2672 = vmatpush1.bf16.msra.mxu0 %v2181
        %2673 = vmatprep.subr.bf16.mxu0 %v2178
        %2674 = vmatpush1.bf16.msra.mxu0 %v2177
        %2675 = vmatprep.subr.bf16.mxu0 %v2174
        %2676 = vmatpush1.bf16.msra.mxu0 %v2173
        %2677 = vmatprep.subr.bf16.mxu0 %v2170
        %2678 = vmatpush1.bf16.msra.mxu0 %v2169
        %2679 = vmatprep.subr.bf16.mxu0 %v2166
        %2680 = vmatpush1.bf16.msra.mxu0 %v2165
        %2681 = vmatprep.subr.bf16.mxu0 %v2162
        %2682 = vmatpush1.bf16.msra.mxu0 %v2161
        %2683 = vmatprep.subr.bf16.mxu0 %v2158
        %2684 = vmatpush1.bf16.msra.mxu0 %v2157
        %2685 = vmatprep.subr.bf16.mxu0 %v2218
        %2686 = vmatpush2.bf16.msra.mxu0 %v2217
        %2687 = vmatprep.subr.bf16.mxu0 %v2214
        %2688 = vmatpush2.bf16.msra.mxu0 %v2213
        %2689 = vmatprep.subr.bf16.mxu0 %v2210
        %2690 = vmatpush2.bf16.msra.mxu0 %v2209
        %2691 = vmatprep.subr.bf16.mxu0 %v2206
        %2692 = vmatpush2.bf16.msra.mxu0 %v2205
        %2693 = vmatprep.subr.bf16.mxu0 %v2202
        %2694 = vmatpush2.bf16.msra.mxu0 %v2201
        %2695 = vmatprep.subr.bf16.mxu0 %v2198
        %2696 = vmatpush2.bf16.msra.mxu0 %v2197
        %2697 = vmatprep.subr.bf16.mxu0 %v2194
        %2698 = vmatpush2.bf16.msra.mxu0 %v2193
        %2699 = vmatprep.subr.bf16.mxu0 %v2190
        %2700 = vmatpush2.bf16.msra.mxu0 %v2189
        %2701 = vmatprep.mubr.bf16.mxu0 %v1104
        %2702 = vmatmul.mubr.bf16.gmra.mxu0 %v1103
        %v2703 = vpop.f32.mrf.mxu0
        %v2704 = vadd.f32 %v1372, %v2703
        %v2705 = vpop.f32.mrf.mxu0
        %v2706 = vadd.f32 %v1376, %v2705
        %v2707 = vpop.f32.mrf.mxu0
        %v2708 = vpop.f32.mrf.mxu0
        %2709 = vdwg.mxu0
        %2710 = vmatprep.subr.bf16.mxu0 %v2250
        %2711 = vmatpush1.bf16.msra.mxu0 %v2249
        %2712 = vmatprep.subr.bf16.mxu0 %v2246
        %2713 = vmatpush1.bf16.msra.mxu0 %v2245
        %2714 = vmatprep.subr.bf16.mxu0 %v2242
        %2715 = vmatpush1.bf16.msra.mxu0 %v2241
        %2716 = vmatprep.subr.bf16.mxu0 %v2238
        %2717 = vmatpush1.bf16.msra.mxu0 %v2237
        %2718 = vmatprep.subr.bf16.mxu0 %v2234
        %2719 = vmatpush1.bf16.msra.mxu0 %v2233
        %2720 = vmatprep.subr.bf16.mxu0 %v2230
        %2721 = vmatpush1.bf16.msra.mxu0 %v2229
        %2722 = vmatprep.subr.bf16.mxu0 %v2226
        %2723 = vmatpush1.bf16.msra.mxu0 %v2225
        %2724 = vmatprep.subr.bf16.mxu0 %v2222
        %2725 = vmatpush1.bf16.msra.mxu0 %v2221
        %2726 = vmatprep.subr.bf16.mxu0 %v2282
        %2727 = vmatpush2.bf16.msra.mxu0 %v2281
        %2728 = vmatprep.subr.bf16.mxu0 %v2278
        %2729 = vmatpush2.bf16.msra.mxu0 %v2277
        %2730 = vmatprep.subr.bf16.mxu0 %v2274
        %2731 = vmatpush2.bf16.msra.mxu0 %v2273
        %2732 = vmatprep.subr.bf16.mxu0 %v2270
        %2733 = vmatpush2.bf16.msra.mxu0 %v2269
        %2734 = vmatprep.subr.bf16.mxu0 %v2266
        %2735 = vmatpush2.bf16.msra.mxu0 %v2265
        %2736 = vmatprep.subr.bf16.mxu0 %v2262
        %2737 = vmatpush2.bf16.msra.mxu0 %v2261
        %2738 = vmatprep.subr.bf16.mxu0 %v2258
        %2739 = vmatpush2.bf16.msra.mxu0 %v2257
        %2740 = vmatprep.subr.bf16.mxu0 %v2254
        %2741 = vmatpush2.bf16.msra.mxu0 %v2253
        %2742 = vmatprep.mubr.bf16.mxu0 %v1106
        %2743 = vmatmul.mubr.bf16.gmra.mxu0 %v1105
        %v2744 = vpop.f32.mrf.mxu0
        %v2745 = vadd.f32 %v2704, %v2744
        %v2746 = vpop.f32.mrf.mxu0
        %v2747 = vadd.f32 %v2706, %v2746
        %v2748 = vpop.f32.mrf.mxu0
        %v2749 = vpop.f32.mrf.mxu0
        %2750 = vdwg.mxu0
        %2751 = vmatprep.subr.bf16.mxu0 %v2314
        %2752 = vmatpush1.bf16.msra.mxu0 %v2313
        %2753 = vmatprep.subr.bf16.mxu0 %v2310
        %2754 = vmatpush1.bf16.msra.mxu0 %v2309
        %2755 = vmatprep.subr.bf16.mxu0 %v2306
        %2756 = vmatpush1.bf16.msra.mxu0 %v2305
        %2757 = vmatprep.subr.bf16.mxu0 %v2302
        %2758 = vmatpush1.bf16.msra.mxu0 %v2301
        %2759 = vmatprep.subr.bf16.mxu0 %v2298
        %2760 = vmatpush1.bf16.msra.mxu0 %v2297
        %2761 = vmatprep.subr.bf16.mxu0 %v2294
        %2762 = vmatpush1.bf16.msra.mxu0 %v2293
        %2763 = vmatprep.subr.bf16.mxu0 %v2290
        %2764 = vmatpush1.bf16.msra.mxu0 %v2289
        %2765 = vmatprep.subr.bf16.mxu0 %v2286
        %2766 = vmatpush1.bf16.msra.mxu0 %v2285
        %2767 = vmatprep.subr.bf16.mxu0 %v2346
        %2768 = vmatpush2.bf16.msra.mxu0 %v2345
        %2769 = vmatprep.subr.bf16.mxu0 %v2342
        %2770 = vmatpush2.bf16.msra.mxu0 %v2341
        %2771 = vmatprep.subr.bf16.mxu0 %v2338
        %2772 = vmatpush2.bf16.msra.mxu0 %v2337
        %2773 = vmatprep.subr.bf16.mxu0 %v2334
        %2774 = vmatpush2.bf16.msra.mxu0 %v2333
        %2775 = vmatprep.subr.bf16.mxu0 %v2330
        %2776 = vmatpush2.bf16.msra.mxu0 %v2329
        %2777 = vmatprep.subr.bf16.mxu0 %v2326
        %2778 = vmatpush2.bf16.msra.mxu0 %v2325
        %2779 = vmatprep.subr.bf16.mxu0 %v2322
        %2780 = vmatpush2.bf16.msra.mxu0 %v2321
        %2781 = vmatprep.subr.bf16.mxu0 %v2318
        %2782 = vmatpush2.bf16.msra.mxu0 %v2317
        %2783 = vmatprep.mubr.bf16.mxu0 %v1108
        %2784 = vmatmul.mubr.bf16.gmra.mxu0 %v1107
        %v2785 = vpop.f32.mrf.mxu0
        %v2786 = vadd.f32 %v2745, %v2785
        %v2787 = vpop.f32.mrf.mxu0
        %v2788 = vadd.f32 %v2747, %v2787
        %v2789 = vpop.f32.mrf.mxu0
        %v2790 = vpop.f32.mrf.mxu0
        %2791 = vdwg.mxu0
        %2792 = vmatprep.subr.bf16.mxu0 %v2378
        %2793 = vmatpush1.bf16.msra.mxu0 %v2377
        %2794 = vmatprep.subr.bf16.mxu0 %v2374
        %2795 = vmatpush1.bf16.msra.mxu0 %v2373
        %2796 = vmatprep.subr.bf16.mxu0 %v2370
        %2797 = vmatpush1.bf16.msra.mxu0 %v2369
        %2798 = vmatprep.subr.bf16.mxu0 %v2366
        %2799 = vmatpush1.bf16.msra.mxu0 %v2365
        %2800 = vmatprep.subr.bf16.mxu0 %v2362
        %2801 = vmatpush1.bf16.msra.mxu0 %v2361
        %2802 = vmatprep.subr.bf16.mxu0 %v2358
        %2803 = vmatpush1.bf16.msra.mxu0 %v2357
        %2804 = vmatprep.subr.bf16.mxu0 %v2354
        %2805 = vmatpush1.bf16.msra.mxu0 %v2353
        %2806 = vmatprep.subr.bf16.mxu0 %v2350
        %2807 = vmatpush1.bf16.msra.mxu0 %v2349
        %2808 = vmatprep.subr.bf16.mxu0 %v2410
        %2809 = vmatpush2.bf16.msra.mxu0 %v2409
        %2810 = vmatprep.subr.bf16.mxu0 %v2406
        %2811 = vmatpush2.bf16.msra.mxu0 %v2405
        %2812 = vmatprep.subr.bf16.mxu0 %v2402
        %2813 = vmatpush2.bf16.msra.mxu0 %v2401
        %2814 = vmatprep.subr.bf16.mxu0 %v2398
        %2815 = vmatpush2.bf16.msra.mxu0 %v2397
        %2816 = vmatprep.subr.bf16.mxu0 %v2394
        %2817 = vmatpush2.bf16.msra.mxu0 %v2393
        %2818 = vmatprep.subr.bf16.mxu0 %v2390
        %2819 = vmatpush2.bf16.msra.mxu0 %v2389
        %2820 = vmatprep.subr.bf16.mxu0 %v2386
        %2821 = vmatpush2.bf16.msra.mxu0 %v2385
        %2822 = vmatprep.subr.bf16.mxu0 %v2382
        %2823 = vmatpush2.bf16.msra.mxu0 %v2381
        %2824 = vmatprep.mubr.bf16.mxu0 %v1110
        %2825 = vmatmul.mubr.bf16.gmra.mxu0 %v1109
        %v2826 = vpop.f32.mrf.mxu0
        %v2827 = vadd.f32 %v2786, %v2826
        %v2828 = vpop.f32.mrf.mxu0
        %v2829 = vadd.f32 %v2788, %v2828
        %v2830 = vpop.f32.mrf.mxu0
        %v2831 = vpop.f32.mrf.mxu0
        %2832 = vdwg.mxu0
        %2833 = vmatprep.subr.bf16.mxu0 %v2188
        %2834 = vmatpush1.bf16.msra.mxu0 %v2187
        %2835 = vmatprep.subr.bf16.mxu0 %v2184
        %2836 = vmatpush1.bf16.msra.mxu0 %v2183
        %2837 = vmatprep.subr.bf16.mxu0 %v2180
        %2838 = vmatpush1.bf16.msra.mxu0 %v2179
        %2839 = vmatprep.subr.bf16.mxu0 %v2176
        %2840 = vmatpush1.bf16.msra.mxu0 %v2175
        %2841 = vmatprep.subr.bf16.mxu0 %v2172
        %2842 = vmatpush1.bf16.msra.mxu0 %v2171
        %2843 = vmatprep.subr.bf16.mxu0 %v2168
        %2844 = vmatpush1.bf16.msra.mxu0 %v2167
        %2845 = vmatprep.subr.bf16.mxu0 %v2164
        %2846 = vmatpush1.bf16.msra.mxu0 %v2163
        %2847 = vmatprep.subr.bf16.mxu0 %v2160
        %2848 = vmatpush1.bf16.msra.mxu0 %v2159
        %2849 = vmatprep.subr.bf16.mxu0 %v2220
        %2850 = vmatpush2.bf16.msra.mxu0 %v2219
        %2851 = vmatprep.subr.bf16.mxu0 %v2216
        %2852 = vmatpush2.bf16.msra.mxu0 %v2215
        %2853 = vmatprep.subr.bf16.mxu0 %v2212
        %2854 = vmatpush2.bf16.msra.mxu0 %v2211
        %2855 = vmatprep.subr.bf16.mxu0 %v2208
        %2856 = vmatpush2.bf16.msra.mxu0 %v2207
        %2857 = vmatprep.subr.bf16.mxu0 %v2204
        %2858 = vmatpush2.bf16.msra.mxu0 %v2203
        %2859 = vmatprep.subr.bf16.mxu0 %v2200
        %2860 = vmatpush2.bf16.msra.mxu0 %v2199
        %2861 = vmatprep.subr.bf16.mxu0 %v2196
        %2862 = vmatpush2.bf16.msra.mxu0 %v2195
        %2863 = vmatprep.subr.bf16.mxu0 %v2192
        %2864 = vmatpush2.bf16.msra.mxu0 %v2191
        %2865 = vmatprep.mubr.bf16.mxu0 %v1104
        %2866 = vmatmul.mubr.bf16.gmra.mxu0 %v1103
        %v2867 = vpop.f32.mrf.mxu0
        %v2868 = vadd.f32 %v1380, %v2867
        %v2869 = vpop.f32.mrf.mxu0
        %v2870 = vadd.f32 %v1384, %v2869
        %v2871 = vpop.f32.mrf.mxu0
        %v2872 = vpop.f32.mrf.mxu0
        %2873 = vdwg.mxu0
        %2874 = vmatprep.subr.bf16.mxu0 %v2252
        %2875 = vmatpush1.bf16.msra.mxu0 %v2251
        %2876 = vmatprep.subr.bf16.mxu0 %v2248
        %2877 = vmatpush1.bf16.msra.mxu0 %v2247
        %2878 = vmatprep.subr.bf16.mxu0 %v2244
        %2879 = vmatpush1.bf16.msra.mxu0 %v2243
        %2880 = vmatprep.subr.bf16.mxu0 %v2240
        %2881 = vmatpush1.bf16.msra.mxu0 %v2239
        %2882 = vmatprep.subr.bf16.mxu0 %v2236
        %2883 = vmatpush1.bf16.msra.mxu0 %v2235
        %2884 = vmatprep.subr.bf16.mxu0 %v2232
        %2885 = vmatpush1.bf16.msra.mxu0 %v2231
        %2886 = vmatprep.subr.bf16.mxu0 %v2228
        %2887 = vmatpush1.bf16.msra.mxu0 %v2227
        %2888 = vmatprep.subr.bf16.mxu0 %v2224
        %2889 = vmatpush1.bf16.msra.mxu0 %v2223
        %2890 = vmatprep.subr.bf16.mxu0 %v2284
        %2891 = vmatpush2.bf16.msra.mxu0 %v2283
        %2892 = vmatprep.subr.bf16.mxu0 %v2280
        %2893 = vmatpush2.bf16.msra.mxu0 %v2279
        %2894 = vmatprep.subr.bf16.mxu0 %v2276
        %2895 = vmatpush2.bf16.msra.mxu0 %v2275
        %2896 = vmatprep.subr.bf16.mxu0 %v2272
        %2897 = vmatpush2.bf16.msra.mxu0 %v2271
        %2898 = vmatprep.subr.bf16.mxu0 %v2268
        %2899 = vmatpush2.bf16.msra.mxu0 %v2267
        %2900 = vmatprep.subr.bf16.mxu0 %v2264
        %2901 = vmatpush2.bf16.msra.mxu0 %v2263
        %2902 = vmatprep.subr.bf16.mxu0 %v2260
        %2903 = vmatpush2.bf16.msra.mxu0 %v2259
        %2904 = vmatprep.subr.bf16.mxu0 %v2256
        %2905 = vmatpush2.bf16.msra.mxu0 %v2255
        %2906 = vmatprep.mubr.bf16.mxu0 %v1106
        %2907 = vmatmul.mubr.bf16.gmra.mxu0 %v1105
        %v2908 = vpop.f32.mrf.mxu0
        %v2909 = vadd.f32 %v2868, %v2908
        %v2910 = vpop.f32.mrf.mxu0
        %v2911 = vadd.f32 %v2870, %v2910
        %v2912 = vpop.f32.mrf.mxu0
        %v2913 = vpop.f32.mrf.mxu0
        %2914 = vdwg.mxu0
        %2915 = vmatprep.subr.bf16.mxu0 %v2316
        %2916 = vmatpush1.bf16.msra.mxu0 %v2315
        %2917 = vmatprep.subr.bf16.mxu0 %v2312
        %2918 = vmatpush1.bf16.msra.mxu0 %v2311
        %2919 = vmatprep.subr.bf16.mxu0 %v2308
        %2920 = vmatpush1.bf16.msra.mxu0 %v2307
        %2921 = vmatprep.subr.bf16.mxu0 %v2304
        %2922 = vmatpush1.bf16.msra.mxu0 %v2303
        %2923 = vmatprep.subr.bf16.mxu0 %v2300
        %2924 = vmatpush1.bf16.msra.mxu0 %v2299
        %2925 = vmatprep.subr.bf16.mxu0 %v2296
        %2926 = vmatpush1.bf16.msra.mxu0 %v2295
        %2927 = vmatprep.subr.bf16.mxu0 %v2292
        %2928 = vmatpush1.bf16.msra.mxu0 %v2291
        %2929 = vmatprep.subr.bf16.mxu0 %v2288
        %2930 = vmatpush1.bf16.msra.mxu0 %v2287
        %2931 = vmatprep.subr.bf16.mxu0 %v2348
        %2932 = vmatpush2.bf16.msra.mxu0 %v2347
        %2933 = vmatprep.subr.bf16.mxu0 %v2344
        %2934 = vmatpush2.bf16.msra.mxu0 %v2343
        %2935 = vmatprep.subr.bf16.mxu0 %v2340
        %2936 = vmatpush2.bf16.msra.mxu0 %v2339
        %2937 = vmatprep.subr.bf16.mxu0 %v2336
        %2938 = vmatpush2.bf16.msra.mxu0 %v2335
        %2939 = vmatprep.subr.bf16.mxu0 %v2332
        %2940 = vmatpush2.bf16.msra.mxu0 %v2331
        %2941 = vmatprep.subr.bf16.mxu0 %v2328
        %2942 = vmatpush2.bf16.msra.mxu0 %v2327
        %2943 = vmatprep.subr.bf16.mxu0 %v2324
        %2944 = vmatpush2.bf16.msra.mxu0 %v2323
        %2945 = vmatprep.subr.bf16.mxu0 %v2320
        %2946 = vmatpush2.bf16.msra.mxu0 %v2319
        %2947 = vmatprep.mubr.bf16.mxu0 %v1108
        %2948 = vmatmul.mubr.bf16.gmra.mxu0 %v1107
        %v2949 = vpop.f32.mrf.mxu0
        %v2950 = vadd.f32 %v2909, %v2949
        %v2951 = vpop.f32.mrf.mxu0
        %v2952 = vadd.f32 %v2911, %v2951
        %v2953 = vpop.f32.mrf.mxu0
        %v2954 = vpop.f32.mrf.mxu0
        %2955 = vdwg.mxu0
        %2956 = vmatprep.subr.bf16.mxu0 %v2380
        %2957 = vmatpush1.bf16.msra.mxu0 %v2379
        %2958 = vmatprep.subr.bf16.mxu0 %v2376
        %2959 = vmatpush1.bf16.msra.mxu0 %v2375
        %2960 = vmatprep.subr.bf16.mxu0 %v2372
        %2961 = vmatpush1.bf16.msra.mxu0 %v2371
        %2962 = vmatprep.subr.bf16.mxu0 %v2368
        %2963 = vmatpush1.bf16.msra.mxu0 %v2367
        %2964 = vmatprep.subr.bf16.mxu0 %v2364
        %2965 = vmatpush1.bf16.msra.mxu0 %v2363
        %2966 = vmatprep.subr.bf16.mxu0 %v2360
        %2967 = vmatpush1.bf16.msra.mxu0 %v2359
        %2968 = vmatprep.subr.bf16.mxu0 %v2356
        %2969 = vmatpush1.bf16.msra.mxu0 %v2355
        %2970 = vmatprep.subr.bf16.mxu0 %v2352
        %2971 = vmatpush1.bf16.msra.mxu0 %v2351
        %2972 = vmatprep.subr.bf16.mxu0 %v2412
        %2973 = vmatpush2.bf16.msra.mxu0 %v2411
        %2974 = vmatprep.subr.bf16.mxu0 %v2408
        %2975 = vmatpush2.bf16.msra.mxu0 %v2407
        %2976 = vmatprep.subr.bf16.mxu0 %v2404
        %2977 = vmatpush2.bf16.msra.mxu0 %v2403
        %2978 = vmatprep.subr.bf16.mxu0 %v2400
        %2979 = vmatpush2.bf16.msra.mxu0 %v2399
        %2980 = vmatprep.subr.bf16.mxu0 %v2396
        %2981 = vmatpush2.bf16.msra.mxu0 %v2395
        %2982 = vmatprep.subr.bf16.mxu0 %v2392
        %2983 = vmatpush2.bf16.msra.mxu0 %v2391
        %2984 = vmatprep.subr.bf16.mxu0 %v2388
        %2985 = vmatpush2.bf16.msra.mxu0 %v2387
        %2986 = vmatprep.subr.bf16.mxu0 %v2384
        %2987 = vmatpush2.bf16.msra.mxu0 %v2383
        %2988 = vmatprep.mubr.bf16.mxu0 %v1110
        %2989 = vmatmul.mubr.bf16.gmra.mxu0 %v1109
        %v2990 = vpop.f32.mrf.mxu0
        %v2991 = vadd.f32 %v2950, %v2990
        %v2992 = vpop.f32.mrf.mxu0
        %v2993 = vadd.f32 %v2952, %v2992
        %v2994 = vpop.f32.mrf.mxu0
        %v2995 = vpop.f32.mrf.mxu0
        %2996 = vdwg.mxu0
        %v2997 = vxor.u32 %v2827, 2147483648
        %v2998 = vxor.u32 %v2829, 2147483648
        %v2999 = vxor.u32 %v2991, 2147483648
        %v3000 = vxor.u32 %v2993, 2147483648
        %v3001 = vmul.f32 %v2997, 1.442695
        %v3002 = vpow.pop %v3001
        %v3003 = vmul.f32 %v2998, 1.442695
        %v3004 = vpow.pop %v3003
        %v3005 = vmul.f32 %v2999, 1.442695
        %v3006 = vpow.pop %v3005
        %v3007 = vmul.f32 %v3000, 1.442695
        %v3008 = vpow.pop %v3007
        %v3009 = vadd.f32 %v3002, 1.0
        %v3010 = vadd.f32 %v3004, 1.0
        %v3011 = vadd.f32 %v3006, 1.0
        %v3012 = vadd.f32 %v3008, 1.0
        %v3013 = vrcp.pop %v3009
        %v3014 = vmul.f32 1.0, %v3013
        %v3015 = vrcp.pop %v3010
        %v3016 = vmul.f32 1.0, %v3015
        %v3017 = vrcp.pop %v3011
        %v3018 = vmul.f32 1.0, %v3017
        %v3019 = vrcp.pop %v3012
        %v3020 = vmul.f32 1.0, %v3019
        %v3025 = vcombine.low %v3014, %v3016
        %v3026 = vcombine.low %v3018, %v3020
        %v3028 = vunpack.c.l.s4 1983009808
        %v3029 = vunpack.c.0.s8 %v3028
        %v3030 = vlaneseq
        %v3031 = vshrl.u32 %v3030, 7
        %v3032 = vsub.s32 %v3029, %v3031
        %v3033 = vrot.slane %v3025, %v3032
        %v3035 = vunpack.c.l.s4 1983009808
        %v3036 = vunpack.c.0.s8 %v3035
        %v3037 = vlaneseq
        %v3038 = vshrl.u32 %v3037, 7
        %v3039 = vsub.s32 %v3036, %v3038
        %v3040 = vrot.slane %v3026, %v3039
        %v3041 = vcombine.low %v3033, %v3040
        %3043 = vst [vmem:[%s431] sm:$0xff] %v3041
        %s3044 = smul.u32 4, %s28
        %p3045 = scmp.lt.s32.totalorder %s29, 0
        %s3046 = scalar_select %p3045, %s29, 0
        %p3047 = scmp.lt.s32.totalorder %s3044, 7
        %s3048 = scalar_select %p3047, %s3044, 7
        %s3049 = smul.addr %s3046, 8
        %s3050 = sadd.s32 %s3048, %s3049
        %s3051 = smul.addr %s3050, 2
        %s3052 = scalar_lea.vmem %s7, %s3051
        // Predicated region
        $region77: #{rn_forward.1} parent=47 // pred_check
          %p3053 = pneg %p218
        $region78: #{rn_forward.1} parent=47 // pred_check_branch
          %3055 = sbr.rel (%p3053) target = $region80
        $region79: #{rn_forward.1} parent=47 // pred_region
          %s3056 = smul.u32 4, %s28
        $region80: #{rn_forward.1} parent=47 // pred_fallthru
          _
      $region48: #{rn_forward.1} parent=5 // pred_fallthru
        _
      %p3057 = scmp.le.s32.totalorder 2, %s19
      // Predicated region
      $region81: #{rn_forward.1} parent=5 // pred_check
        %p3058 = pneg %p3057
      $region82: #{rn_forward.1} parent=5 // pred_check_branch
        %3060 = sbr.rel (%p3058) target = $region84
      $region83: #{rn_forward.1} parent=5 // pred_region
        %s3061 = ssub.s32 %s19, 2
        // Predicated region
        $region85: #{rn_forward.1} parent=83 // pred_check
          %p3062 = pneg %p224
        $region86: #{rn_forward.1} parent=83 // pred_check_branch
          %3064 = sbr.rel (%p3062) target = $region88
        $region87: #{rn_forward.1} parent=83 // pred_region
          %s3065 = smul.u32 4, %s30
          %p3066 = scmp.lt.s32.totalorder %s31, 0
          %s3067 = scalar_select %p3066, %s31, 0
          %p3068 = scmp.lt.s32.totalorder %s3065, 7
          %s3069 = scalar_select %p3068, %s3065, 7
          %s3070 = smul.addr %s3067, 8
          %s3071 = sadd.s32 %s3069, %s3070
          %s3072 = smul.addr %s3071, 2
          %s3073 = scalar_lea.vmem %s7, %s3072
        $region88: #{rn_forward.1} parent=83 // pred_fallthru
          _
      $region84: #{rn_forward.1} parent=5 // pred_fallthru
        _
    $region6: #{rn_forward.1} parent=1 // loop_footer
      %s23 = sadd.s32 1, %s19
    $region7: #{rn_forward.1} parent=1 // loop_footer_branch
      %18 = sbr.rel target = $region3
    $region8: #{rn_forward.1} parent=1 // loop_exit
      _
    %3074 = vsyncpa [#allocation3], 1
    %s3075 = scalar_lea.sflag [#allocation3], 1
    %3076 = vsyncpa %s3075, 1
    %3077 = vsyncpa [#allocation5], 1
    %3078 = vsyncpa [#allocation8], 1
    %3079 = vsyncpa [#allocation11], 1
    %s3080 = scalar_lea.sflag [#allocation11], 1
    %3081 = vsyncpa %s3080, 1

</llo_original>
